<compile_context>
chip_gen: v7x
topology: tpu7x:2x2x1
jax: 0.10.0
libtpu: 0.0.40
codegen_flags: <defaults>
</compile_context>

<pallas_src>
import jax
import jax.numpy as jnp
from jax.experimental import pallas as pl
from jax.experimental.pallas import tpu as pltpu


_LANE = 128
_VMEM_BUDGET = 36 << 20   # working-set budget; leaves headroom inside v7x's 64 MiB
_VMEM_LIMIT = 48 << 20    # scoped VMEM limit passed to Mosaic (safe on all gens)


def _round_up(n: int, m: int) -> int:
    return ((n + m - 1) // m) * m


def _pad_nn(x, Np: int):
    """Zero-pad the trailing two (node) dims of x up to Np (no-op if already Np)."""
    if x.shape[-2] == Np and x.shape[-1] == Np:
        return x
    pads = [(0, 0)] * (x.ndim - 2) + [(0, Np - x.shape[-2]), (0, Np - x.shape[-1])]
    return jnp.pad(x, pads)


# --------------------------------------------------------------------------- GTConv pre-mix


def _gtconv_mix_kernel(w_ref, a_ref, q_ref):
    """Q[o] = sum_c softmax(W)[o,c] * A[c] for one (t,t) node tile.

    w_ref : SMEM (c_out, c_in) softmaxed filter
    a_ref : VMEM (c_in, t, t) f32 adjacency tile (all channels, read once)
    q_ref : VMEM (c_out, t, t) output tile in the MXU operand dtype
    """
    c_out = q_ref.shape[0]
    c_in = a_ref.shape[0]
    for o in range(c_out):
        acc = w_ref[o, 0] * a_ref[0]
        for c in range(1, c_in):
            acc = acc + w_ref[o, c] * a_ref[c]
        q_ref[o] = acc.astype(q_ref.dtype)


def _pick_premix_tile(Np: int, c_in: int, c_out: int, out_bytes: int) -> int:
    for t in (512, 256, 128):
        if Np % t == 0:
            vmem = 2 * c_in * t * t * 4 + 2 * c_out * t * t * out_bytes
            if vmem <= _VMEM_BUDGET:
                return t
    return 128


def gtconv_premix(A, filt, *, out_dtype):
    """GTConv channel mix: A (c_in, Np, Np) f32, filt (c_out, c_in) -> Q (c_out, Np, Np)."""
    c_out, c_in = filt.shape
    _, Np, _ = A.shape
    ob = jnp.dtype(out_dtype).itemsize
    t = _pick_premix_tile(Np, c_in, c_out, ob)
    grid = (Np // t, Np // t)

    return pl.pallas_call(
        _gtconv_mix_kernel,
        out_shape=jax.ShapeDtypeStruct((c_out, Np, Np), out_dtype),
        grid_spec=pltpu.PrefetchScalarGridSpec(
            num_scalar_prefetch=0,
            grid=grid,
            in_specs=[
                pl.BlockSpec(memory_space=pltpu.MemorySpace.SMEM),        # softmax(W)
                pl.BlockSpec((c_in, t, t), lambda i, j: (0, i, j)),       # A tile (all chans)
            ],
            out_specs=pl.BlockSpec((c_out, t, t), lambda i, j: (0, i, j)),
        ),
        compiler_params=pltpu.CompilerParams(
            dimension_semantics=("parallel", "parallel"),
            vmem_limit_bytes=_VMEM_LIMIT,
        ),
        cost_estimate=pl.CostEstimate(
            flops=2 * c_out * c_in * Np * Np,
            transcendentals=0,
            bytes_accessed=(c_in * 4 + c_out * ob) * Np * Np,
        ),
    )(filt, A)


# --------------------------------------------------------------------------- hybrid product


def _gt_product_kernel(lhs_ref, rhs_ref, h_ref):
    """One (o, i, j, k) tile of H[o] = LHS[o] @ RHS[o].

    lhs_ref : VMEM (1, tm, tk)   operand-dtype tile
    rhs_ref : VMEM (1, tk, tn)   operand-dtype tile
    h_ref   : VMEM (1, tm, tn)   f32 output tile, resident across the k axis
    """
    k = pl.program_id(3)
    prod = jnp.dot(lhs_ref[0], rhs_ref[0], preferred_element_type=jnp.float32)

    @pl.when(k == 0)
    def _init():
        h_ref[0] = prod

    @pl.when(k > 0)
    def _acc():
        h_ref[0] += prod


def _pick_product_tiles(Np: int, c_out: int, itemsize: int):
    mn_cands = [t for t in (1024, 512, 256, 128) if Np % t == 0]
    k_cands = [t for t in (512, 256, 128) if Np % t == 0]
    for t in mn_cands:
        for k in k_cands:
            # double-buffered lhs + rhs operand tiles + double-buffered f32 output block
            vmem = 2 * (t * k + k * t) * itemsize + 2 * t * t * 4
            if vmem > _VMEM_BUDGET:
                continue
            # keep >= 2 parallel output blocks so both v7x TensorCores stay busy
            if c_out * (Np // t) * (Np // t) >= 2 or t == mn_cands[-1]:
                return t, t, k
    return 128, 128, 128


def _gt_product(lhs, rhs, *, tm=None, tn=None, tk=None):
    """Per-channel matmul H[o] = lhs[o] @ rhs[o], f32 output. Shapes (c_out, Np, Np)."""
    c_out, Np, _ = lhs.shape
    assert rhs.shape == (c_out, Np, Np)
    assert lhs.dtype == rhs.dtype
    ob = jnp.dtype(lhs.dtype).itemsize

    atm, atn, atk = _pick_product_tiles(Np, c_out, ob)
    tm = tm or atm
    tn = tn or atn
    tk = tk or atk
    assert Np % tm == 0 and Np % tn == 0 and Np % tk == 0, (
        "tile sizes must divide the (padded) node count")
    grid = (c_out, Np // tm, Np // tn, Np // tk)

    flops = 2 * c_out * Np * Np * Np
    # operands are re-fetched once per opposite output-tile row/column; output written once
    bytes_accessed = c_out * (Np * Np * ob * (Np // tn + Np // tm) + Np * Np * 4)

    return pl.pallas_call(
        _gt_product_kernel,
        out_shape=jax.ShapeDtypeStruct((c_out, Np, Np), jnp.float32),
        grid_spec=pltpu.PrefetchScalarGridSpec(
            num_scalar_prefetch=0,
            grid=grid,
            in_specs=[
                pl.BlockSpec((1, tm, tk), lambda o, i, j, k: (o, i, k)),
                pl.BlockSpec((1, tk, tn), lambda o, i, j, k: (o, k, j)),
            ],
            out_specs=pl.BlockSpec((1, tm, tn), lambda o, i, j, k: (o, i, j)),
        ),
        compiler_params=pltpu.CompilerParams(
            dimension_semantics=("parallel", "parallel", "parallel", "arbitrary"),
            vmem_limit_bytes=_VMEM_LIMIT,
        ),
        cost_estimate=pl.CostEstimate(
            flops=flops, transcendentals=0, bytes_accessed=bytes_accessed),
    )(lhs, rhs)


# --------------------------------------------------------------------------- GTLayer wrappers


def gtlayer_first(A, weight1, weight2, *, operand_dtype=jnp.bfloat16,
                  tm=None, tn=None, tk=None):
    """first=True path. A: (C_in, N, N), weight1/weight2: (C_out, C_in). Returns (H, W)."""
    c_out, c_in = weight1.shape
    ci, N, N2 = A.shape
    assert ci == c_in and N == N2
    A = A.astype(jnp.float32)
    f1 = jax.nn.softmax(weight1.astype(jnp.float32), axis=1)
    f2 = jax.nn.softmax(weight2.astype(jnp.float32), axis=1)

    Np = _round_up(N, _LANE)
    Ap = _pad_nn(A, Np)

    Q1 = gtconv_premix(Ap, f1, out_dtype=operand_dtype)   # conv1(A)
    Q2 = gtconv_premix(Ap, f2, out_dtype=operand_dtype)   # conv2(A)
    Hp = _gt_product(Q1, Q2, tm=tm, tn=tn, tk=tk)         # adj_product_graph
    H = Hp[:, :N, :N]
    return H, [f1, f2]


def gtlayer_not_first(A, H_prev, weight1, *, operand_dtype=jnp.bfloat16,
                      tm=None, tn=None, tk=None):
    """first=False path. A: (C_in, N, N), H_prev: (C_out, N, N). Returns (H, W)."""
    c_out, c_in = weight1.shape
    ci, N, N2 = A.shape
    assert ci == c_in and N == N2
    assert H_prev.shape == (c_out, N, N)
    A = A.astype(jnp.float32)
    f1 = jax.nn.softmax(weight1.astype(jnp.float32), axis=1)

    Np = _round_up(N, _LANE)
    Ap = _pad_nn(A, Np)

    Q = gtconv_premix(Ap, f1, out_dtype=operand_dtype)               # conv1(A)
    Hprev_p = _pad_nn(H_prev.astype(operand_dtype), Np)              # result_A = H_
    Hp = _gt_product(Hprev_p, Q, tm=tm, tn=tn, tk=tk)
    H = Hp[:, :N, :N]
    return H, [f1]


# --------------------------------------------------------------------------- references


def _mix_ref(A, w):
    filt = jax.nn.softmax(w, axis=1)
    return jnp.sum(filt[:, :, None, None] * A[None], axis=1)


def _ref_first(A, w1, w2, operand_dtype=jnp.float32):
    Q1 = _mix_ref(A, w1).astype(operand_dtype).astype(jnp.float32)
    Q2 = _mix_ref(A, w2).astype(operand_dtype).astype(jnp.float32)
    return jnp.einsum('onk,okm->onm', Q1, Q2, precision=jax.lax.Precision.HIGHEST)


def _ref_not_first(A, H_prev, w1, operand_dtype=jnp.float32):
    Q = _mix_ref(A, w1).astype(operand_dtype).astype(jnp.float32)
    L = H_prev.astype(operand_dtype).astype(jnp.float32)
    return jnp.einsum('onk,okm->onm', L, Q, precision=jax.lax.Precision.HIGHEST)


if __name__ == "__main__":
    key = jax.random.PRNGKey(0)
    k_a, k_w1, k_w2, k_h, k_a2 = jax.random.split(key, 5)

    C_IN, C_OUT, N = 4, 2, 256  # 4 relation types, 2 output channels, 256 nodes

    # Dense edge-weight adjacency stack (nonnegative, like DGL edge weights).
    A = jax.random.uniform(k_a, (C_IN, N, N), dtype=jnp.float32)
    # nn.init.normal_(std=0.01), deterministic.
    w1 = 0.01 * jax.random.normal(k_w1, (C_OUT, C_IN), dtype=jnp.float32)
    w2 = 0.01 * jax.random.normal(k_w2, (C_OUT, C_IN), dtype=jnp.float32)

    # --- first=True, bf16 MXU operands (default); 128 tiles exercise the K reduction ---
    H, W = gtlayer_first(A, w1, w2, tm=128, tn=128, tk=128)
    H = jax.block_until_ready(H)
    assert H.shape == (C_OUT, N, N)
    H_ref_bf16 = _ref_first(A, w1, w2, operand_dtype=jnp.bfloat16)
    H_ref_f32 = _ref_first(A, w1, w2, operand_dtype=jnp.float32)
    assert jnp.allclose(H, H_ref_bf16, rtol=1e-3, atol=1e-2)      # matched operand dtype
    assert jnp.allclose(H, H_ref_f32, rtol=3e-2, atol=5e-1)       # loose vs pure f32

    # --- first=True, exact f32 operand path (bit-parity flag), auto tile pick ---
    H32, _ = gtlayer_first(A, w1, w2, operand_dtype=jnp.float32)
    H32 = jax.block_until_ready(H32)
    assert jnp.allclose(H32, H_ref_f32, rtol=1e-3, atol=1e-2)

    # --- first=False, non-128-multiple N exercises the zero-pad + slice path ---
    N2 = 200
    A2 = jax.random.uniform(k_a2, (C_IN, N2, N2), dtype=jnp.float32)
    H_prev = jax.random.uniform(k_h, (C_OUT, N2, N2), dtype=jnp.float32)
    H2, W2 = gtlayer_not_first(A2, H_prev, w1)
    H2 = jax.block_until_ready(H2)
    assert H2.shape == (C_OUT, N2, N2)
    H2_ref = _ref_not_first(A2, H_prev, w1, operand_dtype=jnp.bfloat16)
    assert jnp.allclose(H2, H2_ref, rtol=1e-3, atol=1e-2)

    print("KERNEL_OK")
</pallas_src>

<mosaic_0001>
module attributes {stable_mosaic.version = 11 : i64} {
  func.func @_gtconv_mix_kernel(%arg0: i32, %arg1: i32, %arg2: memref<2x4xf32, #tpu.memory_space<smem>>, %arg3: memref<4x256x256xf32, #tpu.memory_space<vmem>>, %arg4: memref<2x256x256xbf16, #tpu.memory_space<vmem>>) attributes {dimension_semantics = [#tpu.dimension_semantics<parallel>, #tpu.dimension_semantics<parallel>], iteration_bounds = array<i64: 1, 1>, scalar_prefetch = 0 : i64, scratch_operands = 0 : i64, tpu.core_type = #tpu.core_type<tc>, window_params = [{transform_indices = @transform_0, window_bounds = array<i64: 2, 4>}, {transform_indices = @transform_1, window_bounds = array<i64: 4, 256, 256>}, {transform_indices = @transform_2, window_bounds = array<i64: 2, 256, 256>}]} {
    %c0 = arith.constant 0 : index
    %c0_0 = arith.constant 0 : index
    %0 = memref.load %arg2[%c0, %c0_0] : memref<2x4xf32, #tpu.memory_space<smem>>
    %c0_1 = arith.constant 0 : index
    %c0_2 = arith.constant 0 : index
    %c0_3 = arith.constant 0 : index
    %1 = vector.load %arg3[%c0_1, %c0_2, %c0_3] : memref<4x256x256xf32, #tpu.memory_space<vmem>>, vector<1x256x256xf32>
    %2 = vector.shape_cast %1 : vector<1x256x256xf32> to vector<256x256xf32>
    %3 = vector.broadcast %0 : f32 to vector<256x256xf32>
    %4 = arith.mulf %3, %2 : vector<256x256xf32>
    %c0_4 = arith.constant 0 : index
    %c1 = arith.constant 1 : index
    %5 = memref.load %arg2[%c0_4, %c1] : memref<2x4xf32, #tpu.memory_space<smem>>
    %c1_5 = arith.constant 1 : index
    %c0_6 = arith.constant 0 : index
    %c0_7 = arith.constant 0 : index
    %6 = vector.load %arg3[%c1_5, %c0_6, %c0_7] : memref<4x256x256xf32, #tpu.memory_space<vmem>>, vector<1x256x256xf32>
    %7 = vector.shape_cast %6 : vector<1x256x256xf32> to vector<256x256xf32>
    %8 = vector.broadcast %5 : f32 to vector<256x256xf32>
    %9 = arith.mulf %8, %7 : vector<256x256xf32>
    %10 = arith.addf %4, %9 : vector<256x256xf32>
    %c0_8 = arith.constant 0 : index
    %c2 = arith.constant 2 : index
    %11 = memref.load %arg2[%c0_8, %c2] : memref<2x4xf32, #tpu.memory_space<smem>>
    %c2_9 = arith.constant 2 : index
    %c0_10 = arith.constant 0 : index
    %c0_11 = arith.constant 0 : index
    %12 = vector.load %arg3[%c2_9, %c0_10, %c0_11] : memref<4x256x256xf32, #tpu.memory_space<vmem>>, vector<1x256x256xf32>
    %13 = vector.shape_cast %12 : vector<1x256x256xf32> to vector<256x256xf32>
    %14 = vector.broadcast %11 : f32 to vector<256x256xf32>
    %15 = arith.mulf %14, %13 : vector<256x256xf32>
    %16 = arith.addf %10, %15 : vector<256x256xf32>
    %c0_12 = arith.constant 0 : index
    %c3 = arith.constant 3 : index
    %17 = memref.load %arg2[%c0_12, %c3] : memref<2x4xf32, #tpu.memory_space<smem>>
    %c3_13 = arith.constant 3 : index
    %c0_14 = arith.constant 0 : index
    %c0_15 = arith.constant 0 : index
    %18 = vector.load %arg3[%c3_13, %c0_14, %c0_15] : memref<4x256x256xf32, #tpu.memory_space<vmem>>, vector<1x256x256xf32>
    %19 = vector.shape_cast %18 : vector<1x256x256xf32> to vector<256x256xf32>
    %20 = vector.broadcast %17 : f32 to vector<256x256xf32>
    %21 = arith.mulf %20, %19 : vector<256x256xf32>
    %22 = arith.addf %16, %21 : vector<256x256xf32>
    %23 = arith.truncf %22 : vector<256x256xf32> to vector<256x256xbf16>
    %c0_16 = arith.constant 0 : index
    %c0_17 = arith.constant 0 : index
    %c0_18 = arith.constant 0 : index
    %24 = vector.load %arg4[%c0_16, %c0_17, %c0_18] : memref<2x256x256xbf16, #tpu.memory_space<vmem>>, vector<1x256x256xbf16>
    %25 = vector.shape_cast %24 : vector<1x256x256xbf16> to vector<256x256xbf16>
    %26 = vector.shape_cast %23 : vector<256x256xbf16> to vector<1x256x256xbf16>
    tpu.vector_store %arg4[%c0_16, %c0_17, %c0_18], %26 {strides = array<i32>} : memref<2x256x256xbf16, #tpu.memory_space<vmem>>, vector<1x256x256xbf16>,
    %c1_19 = arith.constant 1 : index
    %c0_20 = arith.constant 0 : index
    %27 = memref.load %arg2[%c1_19, %c0_20] : memref<2x4xf32, #tpu.memory_space<smem>>
    %c0_21 = arith.constant 0 : index
    %c0_22 = arith.constant 0 : index
    %c0_23 = arith.constant 0 : index
    %28 = vector.load %arg3[%c0_21, %c0_22, %c0_23] : memref<4x256x256xf32, #tpu.memory_space<vmem>>, vector<1x256x256xf32>
    %29 = vector.shape_cast %28 : vector<1x256x256xf32> to vector<256x256xf32>
    %30 = vector.broadcast %27 : f32 to vector<256x256xf32>
    %31 = arith.mulf %30, %29 : vector<256x256xf32>
    %c1_24 = arith.constant 1 : index
    %c1_25 = arith.constant 1 : index
    %32 = memref.load %arg2[%c1_24, %c1_25] : memref<2x4xf32, #tpu.memory_space<smem>>
    %c1_26 = arith.constant 1 : index
    %c0_27 = arith.constant 0 : index
    %c0_28 = arith.constant 0 : index
    %33 = vector.load %arg3[%c1_26, %c0_27, %c0_28] : memref<4x256x256xf32, #tpu.memory_space<vmem>>, vector<1x256x256xf32>
    %34 = vector.shape_cast %33 : vector<1x256x256xf32> to vector<256x256xf32>
    %35 = vector.broadcast %32 : f32 to vector<256x256xf32>
    %36 = arith.mulf %35, %34 : vector<256x256xf32>
    %37 = arith.addf %31, %36 : vector<256x256xf32>
    %c1_29 = arith.constant 1 : index
    %c2_30 = arith.constant 2 : index
    %38 = memref.load %arg2[%c1_29, %c2_30] : memref<2x4xf32, #tpu.memory_space<smem>>
    %c2_31 = arith.constant 2 : index
    %c0_32 = arith.constant 0 : index
    %c0_33 = arith.constant 0 : index
    %39 = vector.load %arg3[%c2_31, %c0_32, %c0_33] : memref<4x256x256xf32, #tpu.memory_space<vmem>>, vector<1x256x256xf32>
    %40 = vector.shape_cast %39 : vector<1x256x256xf32> to vector<256x256xf32>
    %41 = vector.broadcast %38 : f32 to vector<256x256xf32>
    %42 = arith.mulf %41, %40 : vector<256x256xf32>
    %43 = arith.addf %37, %42 : vector<256x256xf32>
    %c1_34 = arith.constant 1 : index
    %c3_35 = arith.constant 3 : index
    %44 = memref.load %arg2[%c1_34, %c3_35] : memref<2x4xf32, #tpu.memory_space<smem>>
    %c3_36 = arith.constant 3 : index
    %c0_37 = arith.constant 0 : index
    %c0_38 = arith.constant 0 : index
    %45 = vector.load %arg3[%c3_36, %c0_37, %c0_38] : memref<4x256x256xf32, #tpu.memory_space<vmem>>, vector<1x256x256xf32>
    %46 = vector.shape_cast %45 : vector<1x256x256xf32> to vector<256x256xf32>
    %47 = vector.broadcast %44 : f32 to vector<256x256xf32>
    %48 = arith.mulf %47, %46 : vector<256x256xf32>
    %49 = arith.addf %43, %48 : vector<256x256xf32>
    %50 = arith.truncf %49 : vector<256x256xf32> to vector<256x256xbf16>
    %c1_39 = arith.constant 1 : index
    %c0_40 = arith.constant 0 : index
    %c0_41 = arith.constant 0 : index
    %51 = vector.load %arg4[%c1_39, %c0_40, %c0_41] : memref<2x256x256xbf16, #tpu.memory_space<vmem>>, vector<1x256x256xbf16>
    %52 = vector.shape_cast %51 : vector<1x256x256xbf16> to vector<256x256xbf16>
    %53 = vector.shape_cast %50 : vector<256x256xbf16> to vector<1x256x256xbf16>
    tpu.vector_store %arg4[%c1_39, %c0_40, %c0_41], %53 {strides = array<i32>} : memref<2x256x256xbf16, #tpu.memory_space<vmem>>, vector<1x256x256xbf16>,
    return
  }
  func.func @transform_0(%arg0: i32, %arg1: i32) -> (i32, i32) {
    %c0_i32 = arith.constant 0 : i32
    %c0_i32_0 = arith.constant 0 : i32
    %c0_i32_1 = arith.constant 0 : i32
    return %c0_i32, %c0_i32_0 : i32, i32
  }
  func.func @transform_1(%arg0: i32, %arg1: i32) -> (i32, i32, i32) {
    %c0_i32 = arith.constant 0 : i32
    %c0_i32_0 = arith.constant 0 : i32
    return %c0_i32, %arg0, %arg1 : i32, i32, i32
  }
  func.func @transform_2(%arg0: i32, %arg1: i32) -> (i32, i32, i32) {
    %c0_i32 = arith.constant 0 : i32
    %c0_i32_0 = arith.constant 0 : i32
    return %c0_i32, %arg0, %arg1 : i32, i32, i32
  }
}

</mosaic_0001>

<llo_original>
// kernel: tpu_custom_call.1
$region0: #{tpu_custom_call.1}
  #allocation0 [shape = 'u32[]', space=smem, size = 0x4, offset = 0x4, fixed_abs, tag = 'smem constant byte address 0x4 - core index']
  #allocation1 [shape = 'u32[144,128]{1,0:T(1,128)}', space=vmem, size = 0x12000, scoped, tag = 'internal scratch']
  %s0 = inlined_call_operand.hbm [shape: f32[2,4], index: 0, kind: input, shape index: {}]
  %s1 = inlined_call_operand.hbm [shape: f32[4,256,256], index: 1, kind: input, shape index: {}]
  %s2 = inlined_call_operand.hbm [shape: bf16[2,256,256], index: 2, kind: output, shape index: {}]
  %s3 = sld [smem:[#allocation0]]
  $region26: #{tpu_custom_call.1} parent=0
    _
  %s5 = ssub.s32 1, %s3
  %s6 = scalar_select 0, %s5, %s3
  $region1: #{tpu_custom_call.1} parent=0
    #allocation2 [shape = 'u8[1024]{0}', space=smem, size = 0x400, scoped, tag = 'input window, operand 0, single buffered']
    #allocation3 [shape = 's32[1]{0}', space=sflag, size = 0x4, scoped, tag = 'scoped memory for tpu_custom_call.1']
    #allocation4 [shape = 's32[1]{0}', space=sflag, size = 0x4, scoped, tag = 'scoped memory for tpu_custom_call.1']
    #allocation5 [shape = 's32[1]{0}', space=sflag, size = 0x4, scoped, tag = 'scoped memory for tpu_custom_call.1']
    #allocation6 [shape = 'u8[1048576]{0}', space=vmem, size = 0x100000, scoped, tag = 'input window, operand 1, single buffered']
    #allocation7 [shape = 'u8[262144]{0}', space=vmem, size = 0x40000, scoped, tag = 'output window, operand 0, single buffered']
    %7 = vsyncpa [#allocation5], 0
    %8 = vsyncpa [#allocation3], 0
    %9 = vsyncpa [#allocation4], 0
    // Predicated region
    $region2: #{tpu_custom_call.1} parent=1 // pred_check
      _
    $region3: #{tpu_custom_call.1} parent=1 // pred_check_branch
      %11 = sbr.rel (0) target = $region5
    $region4: #{tpu_custom_call.1} parent=1 // pred_region
      %s13 = ssub.s32 32, 32
      %14 = vsyncadd [#allocation5], %s13
      %17 = dma.hbm_to_smem %s0, 32, [#allocation2], [#allocation5]
    $region5: #{tpu_custom_call.1} parent=1 // pred_fallthru
      _
    // Predicated region
    $region6: #{tpu_custom_call.1} parent=1 // pred_check
      _
    $region7: #{tpu_custom_call.1} parent=1 // pred_check_branch
      %19 = sbr.rel (0) target = $region9
    $region8: #{tpu_custom_call.1} parent=1 // pred_region
      %s21 = ssub.s32 32768, 32768
      %22 = vsyncadd [#allocation3], %s21
      %s23 = sshll.u32 [#allocation6], 4
      %s24 = int_to_ptr.vmem [resolvable:$true] %s23
      %29 = dma.hbm_to_vmem [thread:$0]  %s1, 32768, %s24, [#allocation3], 256, 256, 16
    $region9: #{tpu_custom_call.1} parent=1 // pred_fallthru
      _
    // Predicated region
    $region10: #{tpu_custom_call.1} parent=1 // pred_check
      _
    $region11: #{tpu_custom_call.1} parent=1 // pred_check_branch
      %31 = sbr.rel (0) target = $region13
    $region12: #{tpu_custom_call.1} parent=1 // pred_region
      %32 = dma.done [#allocation5], 32
    $region13: #{tpu_custom_call.1} parent=1 // pred_fallthru
      _
    // Predicated region
    $region14: #{tpu_custom_call.1} parent=1 // pred_check
      _
    $region15: #{tpu_custom_call.1} parent=1 // pred_check_branch
      %34 = sbr.rel (0) target = $region17
    $region16: #{tpu_custom_call.1} parent=1 // pred_region
      %35 = dma.done [#allocation3], 32768
    $region17: #{tpu_custom_call.1} parent=1 // pred_fallthru
      _
    %36 = sfence
    %s37 = sld [smem:[#allocation2]]
    %v38 = vld [vmem:[#allocation6] sm:$0xff]
    %v39 = vld [vmem:[#allocation6 + $0x8] sm:$0xff]
    %v40 = vld [vmem:[#allocation6 + $0x10] sm:$0xff]
    %v41 = vld [vmem:[#allocation6 + $0x18] sm:$0xff]
    %v42 = vld [vmem:[#allocation6 + $0x20] sm:$0xff]
    %v43 = vld [vmem:[#allocation6 + $0x28] sm:$0xff]
    %v44 = vld [vmem:[#allocation6 + $0x30] sm:$0xff]
    %v45 = vld [vmem:[#allocation6 + $0x38] sm:$0xff]
    %v46 = vld [vmem:[#allocation6 + $0x40] sm:$0xff]
    %v47 = vld [vmem:[#allocation6 + $0x48] sm:$0xff]
    %v48 = vld [vmem:[#allocation6 + $0x50] sm:$0xff]
    %v49 = vld [vmem:[#allocation6 + $0x58] sm:$0xff]
    %v50 = vld [vmem:[#allocation6 + $0x60] sm:$0xff]
    %v51 = vld [vmem:[#allocation6 + $0x68] sm:$0xff]
    %v52 = vld [vmem:[#allocation6 + $0x70] sm:$0xff]
    %v53 = vld [vmem:[#allocation6 + $0x78] sm:$0xff]
    %v54 = vld [vmem:[#allocation6 + $0x80] sm:$0xff]
    %v55 = vld [vmem:[#allocation6 + $0x88] sm:$0xff]
    %v56 = vld [vmem:[#allocation6 + $0x90] sm:$0xff]
    %v57 = vld [vmem:[#allocation6 + $0x98] sm:$0xff]
    %v58 = vld [vmem:[#allocation6 + $0xa0] sm:$0xff]
    %v59 = vld [vmem:[#allocation6 + $0xa8] sm:$0xff]
    %v60 = vld [vmem:[#allocation6 + $0xb0] sm:$0xff]
    %v61 = vld [vmem:[#allocation6 + $0xb8] sm:$0xff]
    %v62 = vld [vmem:[#allocation6 + $0xc0] sm:$0xff]
    %v63 = vld [vmem:[#allocation6 + $0xc8] sm:$0xff]
    %v64 = vld [vmem:[#allocation6 + $0xd0] sm:$0xff]
    %v65 = vld [vmem:[#allocation6 + $0xd8] sm:$0xff]
    %v66 = vld [vmem:[#allocation6 + $0xe0] sm:$0xff]
    %v67 = vld [vmem:[#allocation6 + $0xe8] sm:$0xff]
    %v68 = vld [vmem:[#allocation6 + $0xf0] sm:$0xff]
    %v69 = vld [vmem:[#allocation6 + $0xf8] sm:$0xff]
    %v70 = vld [vmem:[#allocation6 + $0x100] sm:$0xff]
    %v71 = vld [vmem:[#allocation6 + $0x108] sm:$0xff]
    %v72 = vld [vmem:[#allocation6 + $0x110] sm:$0xff]
    %v73 = vld [vmem:[#allocation6 + $0x118] sm:$0xff]
    %v74 = vld [vmem:[#allocation6 + $0x120] sm:$0xff]
    %v75 = vld [vmem:[#allocation6 + $0x128] sm:$0xff]
    %v76 = vld [vmem:[#allocation6 + $0x130] sm:$0xff]
    %v77 = vld [vmem:[#allocation6 + $0x138] sm:$0xff]
    %v78 = vld [vmem:[#allocation6 + $0x140] sm:$0xff]
    %v79 = vld [vmem:[#allocation6 + $0x148] sm:$0xff]
    %v80 = vld [vmem:[#allocation6 + $0x150] sm:$0xff]
    %v81 = vld [vmem:[#allocation6 + $0x158] sm:$0xff]
    %v82 = vld [vmem:[#allocation6 + $0x160] sm:$0xff]
    %v83 = vld [vmem:[#allocation6 + $0x168] sm:$0xff]
    %v84 = vld [vmem:[#allocation6 + $0x170] sm:$0xff]
    %v85 = vld [vmem:[#allocation6 + $0x178] sm:$0xff]
    %v86 = vld [vmem:[#allocation6 + $0x180] sm:$0xff]
    %v87 = vld [vmem:[#allocation6 + $0x188] sm:$0xff]
    %v88 = vld [vmem:[#allocation6 + $0x190] sm:$0xff]
    %v89 = vld [vmem:[#allocation6 + $0x198] sm:$0xff]
    %v90 = vld [vmem:[#allocation6 + $0x1a0] sm:$0xff]
    %v91 = vld [vmem:[#allocation6 + $0x1a8] sm:$0xff]
    %v92 = vld [vmem:[#allocation6 + $0x1b0] sm:$0xff]
    %v93 = vld [vmem:[#allocation6 + $0x1b8] sm:$0xff]
    %v94 = vld [vmem:[#allocation6 + $0x1c0] sm:$0xff]
    %v95 = vld [vmem:[#allocation6 + $0x1c8] sm:$0xff]
    %v96 = vld [vmem:[#allocation6 + $0x1d0] sm:$0xff]
    %v97 = vld [vmem:[#allocation6 + $0x1d8] sm:$0xff]
    %v98 = vld [vmem:[#allocation6 + $0x1e0] sm:$0xff]
    %v99 = vld [vmem:[#allocation6 + $0x1e8] sm:$0xff]
    %v100 = vld [vmem:[#allocation6 + $0x1f0] sm:$0xff]
    %v101 = vld [vmem:[#allocation6 + $0x1f8] sm:$0xff]
    %v102 = vstv %s37
    %v103 = vmul.f32 %v102, %v38
    %v104 = vmul.f32 %v102, %v39
    %v105 = vmul.f32 %v102, %v40
    %v106 = vmul.f32 %v102, %v41
    %v107 = vmul.f32 %v102, %v42
    %v108 = vmul.f32 %v102, %v43
    %v109 = vmul.f32 %v102, %v44
    %v110 = vmul.f32 %v102, %v45
    %v111 = vmul.f32 %v102, %v46
    %v112 = vmul.f32 %v102, %v47
    %v113 = vmul.f32 %v102, %v48
    %v114 = vmul.f32 %v102, %v49
    %v115 = vmul.f32 %v102, %v50
    %v116 = vmul.f32 %v102, %v51
    %v117 = vmul.f32 %v102, %v52
    %v118 = vmul.f32 %v102, %v53
    %v119 = vmul.f32 %v102, %v54
    %v120 = vmul.f32 %v102, %v55
    %v121 = vmul.f32 %v102, %v56
    %v122 = vmul.f32 %v102, %v57
    %v123 = vmul.f32 %v102, %v58
    %v124 = vmul.f32 %v102, %v59
    %v125 = vmul.f32 %v102, %v60
    %v126 = vmul.f32 %v102, %v61
    %v127 = vmul.f32 %v102, %v62
    %v128 = vmul.f32 %v102, %v63
    %v129 = vmul.f32 %v102, %v64
    %v130 = vmul.f32 %v102, %v65
    %v131 = vmul.f32 %v102, %v66
    %v132 = vmul.f32 %v102, %v67
    %v133 = vmul.f32 %v102, %v68
    %v134 = vmul.f32 %v102, %v69
    %v135 = vmul.f32 %v102, %v70
    %v136 = vmul.f32 %v102, %v71
    %v137 = vmul.f32 %v102, %v72
    %v138 = vmul.f32 %v102, %v73
    %v139 = vmul.f32 %v102, %v74
    %v140 = vmul.f32 %v102, %v75
    %v141 = vmul.f32 %v102, %v76
    %v142 = vmul.f32 %v102, %v77
    %v143 = vmul.f32 %v102, %v78
    %v144 = vmul.f32 %v102, %v79
    %v145 = vmul.f32 %v102, %v80
    %v146 = vmul.f32 %v102, %v81
    %v147 = vmul.f32 %v102, %v82
    %v148 = vmul.f32 %v102, %v83
    %v149 = vmul.f32 %v102, %v84
    %v150 = vmul.f32 %v102, %v85
    %v151 = vmul.f32 %v102, %v86
    %v152 = vmul.f32 %v102, %v87
    %v153 = vmul.f32 %v102, %v88
    %v154 = vmul.f32 %v102, %v89
    %v155 = vmul.f32 %v102, %v90
    %v156 = vmul.f32 %v102, %v91
    %v157 = vmul.f32 %v102, %v92
    %v158 = vmul.f32 %v102, %v93
    %v159 = vmul.f32 %v102, %v94
    %v160 = vmul.f32 %v102, %v95
    %v161 = vmul.f32 %v102, %v96
    %v162 = vmul.f32 %v102, %v97
    %v163 = vmul.f32 %v102, %v98
    %v164 = vmul.f32 %v102, %v99
    %v165 = vmul.f32 %v102, %v100
    %v166 = vmul.f32 %v102, %v101
    %s167 = sld [smem:[#allocation2 + $0x1]]
    %s168 = scalar_lea.vmem [#allocation6], 512
    %v169 = vld [vmem:[%s168] sm:$0xff]
    %v170 = vld [vmem:[%s168 + $0x8] sm:$0xff]
    %v171 = vld [vmem:[%s168 + $0x10] sm:$0xff]
    %v172 = vld [vmem:[%s168 + $0x18] sm:$0xff]
    %v173 = vld [vmem:[%s168 + $0x20] sm:$0xff]
    %v174 = vld [vmem:[%s168 + $0x28] sm:$0xff]
    %v175 = vld [vmem:[%s168 + $0x30] sm:$0xff]
    %v176 = vld [vmem:[%s168 + $0x38] sm:$0xff]
    %v177 = vld [vmem:[%s168 + $0x40] sm:$0xff]
    %v178 = vld [vmem:[%s168 + $0x48] sm:$0xff]
    %v179 = vld [vmem:[%s168 + $0x50] sm:$0xff]
    %v180 = vld [vmem:[%s168 + $0x58] sm:$0xff]
    %v181 = vld [vmem:[%s168 + $0x60] sm:$0xff]
    %v182 = vld [vmem:[%s168 + $0x68] sm:$0xff]
    %v183 = vld [vmem:[%s168 + $0x70] sm:$0xff]
    %v184 = vld [vmem:[%s168 + $0x78] sm:$0xff]
    %v185 = vld [vmem:[%s168 + $0x80] sm:$0xff]
    %v186 = vld [vmem:[%s168 + $0x88] sm:$0xff]
    %v187 = vld [vmem:[%s168 + $0x90] sm:$0xff]
    %v188 = vld [vmem:[%s168 + $0x98] sm:$0xff]
    %v189 = vld [vmem:[%s168 + $0xa0] sm:$0xff]
    %v190 = vld [vmem:[%s168 + $0xa8] sm:$0xff]
    %v191 = vld [vmem:[%s168 + $0xb0] sm:$0xff]
    %v192 = vld [vmem:[%s168 + $0xb8] sm:$0xff]
    %v193 = vld [vmem:[%s168 + $0xc0] sm:$0xff]
    %v194 = vld [vmem:[%s168 + $0xc8] sm:$0xff]
    %v195 = vld [vmem:[%s168 + $0xd0] sm:$0xff]
    %v196 = vld [vmem:[%s168 + $0xd8] sm:$0xff]
    %v197 = vld [vmem:[%s168 + $0xe0] sm:$0xff]
    %v198 = vld [vmem:[%s168 + $0xe8] sm:$0xff]
    %v199 = vld [vmem:[%s168 + $0xf0] sm:$0xff]
    %v200 = vld [vmem:[%s168 + $0xf8] sm:$0xff]
    %v201 = vld [vmem:[%s168 + $0x100] sm:$0xff]
    %v202 = vld [vmem:[%s168 + $0x108] sm:$0xff]
    %v203 = vld [vmem:[%s168 + $0x110] sm:$0xff]
    %v204 = vld [vmem:[%s168 + $0x118] sm:$0xff]
    %v205 = vld [vmem:[%s168 + $0x120] sm:$0xff]
    %v206 = vld [vmem:[%s168 + $0x128] sm:$0xff]
    %v207 = vld [vmem:[%s168 + $0x130] sm:$0xff]
    %v208 = vld [vmem:[%s168 + $0x138] sm:$0xff]
    %v209 = vld [vmem:[%s168 + $0x140] sm:$0xff]
    %v210 = vld [vmem:[%s168 + $0x148] sm:$0xff]
    %v211 = vld [vmem:[%s168 + $0x150] sm:$0xff]
    %v212 = vld [vmem:[%s168 + $0x158] sm:$0xff]
    %v213 = vld [vmem:[%s168 + $0x160] sm:$0xff]
    %v214 = vld [vmem:[%s168 + $0x168] sm:$0xff]
    %v215 = vld [vmem:[%s168 + $0x170] sm:$0xff]
    %v216 = vld [vmem:[%s168 + $0x178] sm:$0xff]
    %v217 = vld [vmem:[%s168 + $0x180] sm:$0xff]
    %v218 = vld [vmem:[%s168 + $0x188] sm:$0xff]
    %v219 = vld [vmem:[%s168 + $0x190] sm:$0xff]
    %v220 = vld [vmem:[%s168 + $0x198] sm:$0xff]
    %v221 = vld [vmem:[%s168 + $0x1a0] sm:$0xff]
    %v222 = vld [vmem:[%s168 + $0x1a8] sm:$0xff]
    %v223 = vld [vmem:[%s168 + $0x1b0] sm:$0xff]
    %v224 = vld [vmem:[%s168 + $0x1b8] sm:$0xff]
    %v225 = vld [vmem:[%s168 + $0x1c0] sm:$0xff]
    %v226 = vld [vmem:[%s168 + $0x1c8] sm:$0xff]
    %v227 = vld [vmem:[%s168 + $0x1d0] sm:$0xff]
    %v228 = vld [vmem:[%s168 + $0x1d8] sm:$0xff]
    %v229 = vld [vmem:[%s168 + $0x1e0] sm:$0xff]
    %v230 = vld [vmem:[%s168 + $0x1e8] sm:$0xff]
    %v231 = vld [vmem:[%s168 + $0x1f0] sm:$0xff]
    %v232 = vld [vmem:[%s168 + $0x1f8] sm:$0xff]
    %v233 = vstv %s167
    %v234 = vmul.f32 %v233, %v169
    %v235 = vmul.f32 %v233, %v170
    %v236 = vmul.f32 %v233, %v171
    %v237 = vmul.f32 %v233, %v172
    %v238 = vmul.f32 %v233, %v173
    %v239 = vmul.f32 %v233, %v174
    %v240 = vmul.f32 %v233, %v175
    %v241 = vmul.f32 %v233, %v176
    %v242 = vmul.f32 %v233, %v177
    %v243 = vmul.f32 %v233, %v178
    %v244 = vmul.f32 %v233, %v179
    %v245 = vmul.f32 %v233, %v180
    %v246 = vmul.f32 %v233, %v181
    %v247 = vmul.f32 %v233, %v182
    %v248 = vmul.f32 %v233, %v183
    %v249 = vmul.f32 %v233, %v184
    %v250 = vmul.f32 %v233, %v185
    %v251 = vmul.f32 %v233, %v186
    %v252 = vmul.f32 %v233, %v187
    %v253 = vmul.f32 %v233, %v188
    %v254 = vmul.f32 %v233, %v189
    %v255 = vmul.f32 %v233, %v190
    %v256 = vmul.f32 %v233, %v191
    %v257 = vmul.f32 %v233, %v192
    %v258 = vmul.f32 %v233, %v193
    %v259 = vmul.f32 %v233, %v194
    %v260 = vmul.f32 %v233, %v195
    %v261 = vmul.f32 %v233, %v196
    %v262 = vmul.f32 %v233, %v197
    %v263 = vmul.f32 %v233, %v198
    %v264 = vmul.f32 %v233, %v199
    %v265 = vmul.f32 %v233, %v200
    %v266 = vmul.f32 %v233, %v201
    %v267 = vmul.f32 %v233, %v202
    %v268 = vmul.f32 %v233, %v203
    %v269 = vmul.f32 %v233, %v204
    %v270 = vmul.f32 %v233, %v205
    %v271 = vmul.f32 %v233, %v206
    %v272 = vmul.f32 %v233, %v207
    %v273 = vmul.f32 %v233, %v208
    %v274 = vmul.f32 %v233, %v209
    %v275 = vmul.f32 %v233, %v210
    %v276 = vmul.f32 %v233, %v211
    %v277 = vmul.f32 %v233, %v212
    %v278 = vmul.f32 %v233, %v213
    %v279 = vmul.f32 %v233, %v214
    %v280 = vmul.f32 %v233, %v215
    %v281 = vmul.f32 %v233, %v216
    %v282 = vmul.f32 %v233, %v217
    %v283 = vmul.f32 %v233, %v218
    %v284 = vmul.f32 %v233, %v219
    %v285 = vmul.f32 %v233, %v220
    %v286 = vmul.f32 %v233, %v221
    %v287 = vmul.f32 %v233, %v222
    %v288 = vmul.f32 %v233, %v223
    %v289 = vmul.f32 %v233, %v224
    %v290 = vmul.f32 %v233, %v225
    %v291 = vmul.f32 %v233, %v226
    %v292 = vmul.f32 %v233, %v227
    %v293 = vmul.f32 %v233, %v228
    %v294 = vmul.f32 %v233, %v229
    %v295 = vmul.f32 %v233, %v230
    %v296 = vmul.f32 %v233, %v231
    %v297 = vmul.f32 %v233, %v232
    %v298 = vadd.f32 %v103, %v234
    %v299 = vadd.f32 %v104, %v235
    %v300 = vadd.f32 %v105, %v236
    %v301 = vadd.f32 %v106, %v237
    %v302 = vadd.f32 %v107, %v238
    %v303 = vadd.f32 %v108, %v239
    %v304 = vadd.f32 %v109, %v240
    %v305 = vadd.f32 %v110, %v241
    %v306 = vadd.f32 %v111, %v242
    %v307 = vadd.f32 %v112, %v243
    %v308 = vadd.f32 %v113, %v244
    %v309 = vadd.f32 %v114, %v245
    %v310 = vadd.f32 %v115, %v246
    %v311 = vadd.f32 %v116, %v247
    %v312 = vadd.f32 %v117, %v248
    %v313 = vadd.f32 %v118, %v249
    %v314 = vadd.f32 %v119, %v250
    %v315 = vadd.f32 %v120, %v251
    %v316 = vadd.f32 %v121, %v252
    %v317 = vadd.f32 %v122, %v253
    %v318 = vadd.f32 %v123, %v254
    %v319 = vadd.f32 %v124, %v255
    %v320 = vadd.f32 %v125, %v256
    %v321 = vadd.f32 %v126, %v257
    %v322 = vadd.f32 %v127, %v258
    %v323 = vadd.f32 %v128, %v259
    %v324 = vadd.f32 %v129, %v260
    %v325 = vadd.f32 %v130, %v261
    %v326 = vadd.f32 %v131, %v262
    %v327 = vadd.f32 %v132, %v263
    %v328 = vadd.f32 %v133, %v264
    %v329 = vadd.f32 %v134, %v265
    %v330 = vadd.f32 %v135, %v266
    %v331 = vadd.f32 %v136, %v267
    %v332 = vadd.f32 %v137, %v268
    %v333 = vadd.f32 %v138, %v269
    %v334 = vadd.f32 %v139, %v270
    %v335 = vadd.f32 %v140, %v271
    %v336 = vadd.f32 %v141, %v272
    %v337 = vadd.f32 %v142, %v273
    %v338 = vadd.f32 %v143, %v274
    %v339 = vadd.f32 %v144, %v275
    %v340 = vadd.f32 %v145, %v276
    %v341 = vadd.f32 %v146, %v277
    %v342 = vadd.f32 %v147, %v278
    %v343 = vadd.f32 %v148, %v279
    %v344 = vadd.f32 %v149, %v280
    %v345 = vadd.f32 %v150, %v281
    %v346 = vadd.f32 %v151, %v282
    %v347 = vadd.f32 %v152, %v283
    %v348 = vadd.f32 %v153, %v284
    %v349 = vadd.f32 %v154, %v285
    %v350 = vadd.f32 %v155, %v286
    %v351 = vadd.f32 %v156, %v287
    %v352 = vadd.f32 %v157, %v288
    %v353 = vadd.f32 %v158, %v289
    %v354 = vadd.f32 %v159, %v290
    %v355 = vadd.f32 %v160, %v291
    %v356 = vadd.f32 %v161, %v292
    %v357 = vadd.f32 %v162, %v293
    %v358 = vadd.f32 %v163, %v294
    %v359 = vadd.f32 %v164, %v295
    %v360 = vadd.f32 %v165, %v296
    %v361 = vadd.f32 %v166, %v297
    %s362 = sld [smem:[#allocation2 + $0x2]]
    %s363 = scalar_lea.vmem [#allocation6], 1024
    %v364 = vld [vmem:[%s363] sm:$0xff]
    %v365 = vld [vmem:[%s363 + $0x8] sm:$0xff]
    %v366 = vld [vmem:[%s363 + $0x10] sm:$0xff]
    %v367 = vld [vmem:[%s363 + $0x18] sm:$0xff]
    %v368 = vld [vmem:[%s363 + $0x20] sm:$0xff]
    %v369 = vld [vmem:[%s363 + $0x28] sm:$0xff]
    %v370 = vld [vmem:[%s363 + $0x30] sm:$0xff]
    %v371 = vld [vmem:[%s363 + $0x38] sm:$0xff]
    %v372 = vld [vmem:[%s363 + $0x40] sm:$0xff]
    %v373 = vld [vmem:[%s363 + $0x48] sm:$0xff]
    %v374 = vld [vmem:[%s363 + $0x50] sm:$0xff]
    %v375 = vld [vmem:[%s363 + $0x58] sm:$0xff]
    %v376 = vld [vmem:[%s363 + $0x60] sm:$0xff]
    %v377 = vld [vmem:[%s363 + $0x68] sm:$0xff]
    %v378 = vld [vmem:[%s363 + $0x70] sm:$0xff]
    %v379 = vld [vmem:[%s363 + $0x78] sm:$0xff]
    %v380 = vld [vmem:[%s363 + $0x80] sm:$0xff]
    %v381 = vld [vmem:[%s363 + $0x88] sm:$0xff]
    %v382 = vld [vmem:[%s363 + $0x90] sm:$0xff]
    %v383 = vld [vmem:[%s363 + $0x98] sm:$0xff]
    %v384 = vld [vmem:[%s363 + $0xa0] sm:$0xff]
    %v385 = vld [vmem:[%s363 + $0xa8] sm:$0xff]
    %v386 = vld [vmem:[%s363 + $0xb0] sm:$0xff]
    %v387 = vld [vmem:[%s363 + $0xb8] sm:$0xff]
    %v388 = vld [vmem:[%s363 + $0xc0] sm:$0xff]
    %v389 = vld [vmem:[%s363 + $0xc8] sm:$0xff]
    %v390 = vld [vmem:[%s363 + $0xd0] sm:$0xff]
    %v391 = vld [vmem:[%s363 + $0xd8] sm:$0xff]
    %v392 = vld [vmem:[%s363 + $0xe0] sm:$0xff]
    %v393 = vld [vmem:[%s363 + $0xe8] sm:$0xff]
    %v394 = vld [vmem:[%s363 + $0xf0] sm:$0xff]
    %v395 = vld [vmem:[%s363 + $0xf8] sm:$0xff]
    %v396 = vld [vmem:[%s363 + $0x100] sm:$0xff]
    %v397 = vld [vmem:[%s363 + $0x108] sm:$0xff]
    %v398 = vld [vmem:[%s363 + $0x110] sm:$0xff]
    %v399 = vld [vmem:[%s363 + $0x118] sm:$0xff]
    %v400 = vld [vmem:[%s363 + $0x120] sm:$0xff]
    %v401 = vld [vmem:[%s363 + $0x128] sm:$0xff]
    %v402 = vld [vmem:[%s363 + $0x130] sm:$0xff]
    %v403 = vld [vmem:[%s363 + $0x138] sm:$0xff]
    %v404 = vld [vmem:[%s363 + $0x140] sm:$0xff]
    %v405 = vld [vmem:[%s363 + $0x148] sm:$0xff]
    %v406 = vld [vmem:[%s363 + $0x150] sm:$0xff]
    %v407 = vld [vmem:[%s363 + $0x158] sm:$0xff]
    %v408 = vld [vmem:[%s363 + $0x160] sm:$0xff]
    %v409 = vld [vmem:[%s363 + $0x168] sm:$0xff]
    %v410 = vld [vmem:[%s363 + $0x170] sm:$0xff]
    %v411 = vld [vmem:[%s363 + $0x178] sm:$0xff]
    %v412 = vld [vmem:[%s363 + $0x180] sm:$0xff]
    %v413 = vld [vmem:[%s363 + $0x188] sm:$0xff]
    %v414 = vld [vmem:[%s363 + $0x190] sm:$0xff]
    %v415 = vld [vmem:[%s363 + $0x198] sm:$0xff]
    %v416 = vld [vmem:[%s363 + $0x1a0] sm:$0xff]
    %v417 = vld [vmem:[%s363 + $0x1a8] sm:$0xff]
    %v418 = vld [vmem:[%s363 + $0x1b0] sm:$0xff]
    %v419 = vld [vmem:[%s363 + $0x1b8] sm:$0xff]
    %v420 = vld [vmem:[%s363 + $0x1c0] sm:$0xff]
    %v421 = vld [vmem:[%s363 + $0x1c8] sm:$0xff]
    %v422 = vld [vmem:[%s363 + $0x1d0] sm:$0xff]
    %v423 = vld [vmem:[%s363 + $0x1d8] sm:$0xff]
    %v424 = vld [vmem:[%s363 + $0x1e0] sm:$0xff]
    %v425 = vld [vmem:[%s363 + $0x1e8] sm:$0xff]
    %v426 = vld [vmem:[%s363 + $0x1f0] sm:$0xff]
    %v427 = vld [vmem:[%s363 + $0x1f8] sm:$0xff]
    %v428 = vstv %s362
    %v429 = vmul.f32 %v428, %v364
    %v430 = vmul.f32 %v428, %v365
    %v431 = vmul.f32 %v428, %v366
    %v432 = vmul.f32 %v428, %v367
    %v433 = vmul.f32 %v428, %v368
    %v434 = vmul.f32 %v428, %v369
    %v435 = vmul.f32 %v428, %v370
    %v436 = vmul.f32 %v428, %v371
    %v437 = vmul.f32 %v428, %v372
    %v438 = vmul.f32 %v428, %v373
    %v439 = vmul.f32 %v428, %v374
    %v440 = vmul.f32 %v428, %v375
    %v441 = vmul.f32 %v428, %v376
    %v442 = vmul.f32 %v428, %v377
    %v443 = vmul.f32 %v428, %v378
    %v444 = vmul.f32 %v428, %v379
    %v445 = vmul.f32 %v428, %v380
    %v446 = vmul.f32 %v428, %v381
    %v447 = vmul.f32 %v428, %v382
    %v448 = vmul.f32 %v428, %v383
    %v449 = vmul.f32 %v428, %v384
    %v450 = vmul.f32 %v428, %v385
    %v451 = vmul.f32 %v428, %v386
    %v452 = vmul.f32 %v428, %v387
    %v453 = vmul.f32 %v428, %v388
    %v454 = vmul.f32 %v428, %v389
    %v455 = vmul.f32 %v428, %v390
    %v456 = vmul.f32 %v428, %v391
    %v457 = vmul.f32 %v428, %v392
    %v458 = vmul.f32 %v428, %v393
    %v459 = vmul.f32 %v428, %v394
    %v460 = vmul.f32 %v428, %v395
    %v461 = vmul.f32 %v428, %v396
    %v462 = vmul.f32 %v428, %v397
    %v463 = vmul.f32 %v428, %v398
    %v464 = vmul.f32 %v428, %v399
    %v465 = vmul.f32 %v428, %v400
    %v466 = vmul.f32 %v428, %v401
    %v467 = vmul.f32 %v428, %v402
    %v468 = vmul.f32 %v428, %v403
    %v469 = vmul.f32 %v428, %v404
    %v470 = vmul.f32 %v428, %v405
    %v471 = vmul.f32 %v428, %v406
    %v472 = vmul.f32 %v428, %v407
    %v473 = vmul.f32 %v428, %v408
    %v474 = vmul.f32 %v428, %v409
    %v475 = vmul.f32 %v428, %v410
    %v476 = vmul.f32 %v428, %v411
    %v477 = vmul.f32 %v428, %v412
    %v478 = vmul.f32 %v428, %v413
    %v479 = vmul.f32 %v428, %v414
    %v480 = vmul.f32 %v428, %v415
    %v481 = vmul.f32 %v428, %v416
    %v482 = vmul.f32 %v428, %v417
    %v483 = vmul.f32 %v428, %v418
    %v484 = vmul.f32 %v428, %v419
    %v485 = vmul.f32 %v428, %v420
    %v486 = vmul.f32 %v428, %v421
    %v487 = vmul.f32 %v428, %v422
    %v488 = vmul.f32 %v428, %v423
    %v489 = vmul.f32 %v428, %v424
    %v490 = vmul.f32 %v428, %v425
    %v491 = vmul.f32 %v428, %v426
    %v492 = vmul.f32 %v428, %v427
    %v493 = vadd.f32 %v298, %v429
    %v494 = vadd.f32 %v299, %v430
    %v495 = vadd.f32 %v300, %v431
    %v496 = vadd.f32 %v301, %v432
    %v497 = vadd.f32 %v302, %v433
    %v498 = vadd.f32 %v303, %v434
    %v499 = vadd.f32 %v304, %v435
    %v500 = vadd.f32 %v305, %v436
    %v501 = vadd.f32 %v306, %v437
    %v502 = vadd.f32 %v307, %v438
    %v503 = vadd.f32 %v308, %v439
    %v504 = vadd.f32 %v309, %v440
    %v505 = vadd.f32 %v310, %v441
    %v506 = vadd.f32 %v311, %v442
    %v507 = vadd.f32 %v312, %v443
    %v508 = vadd.f32 %v313, %v444
    %v509 = vadd.f32 %v314, %v445
    %v510 = vadd.f32 %v315, %v446
    %v511 = vadd.f32 %v316, %v447
    %v512 = vadd.f32 %v317, %v448
    %v513 = vadd.f32 %v318, %v449
    %v514 = vadd.f32 %v319, %v450
    %v515 = vadd.f32 %v320, %v451
    %v516 = vadd.f32 %v321, %v452
    %v517 = vadd.f32 %v322, %v453
    %v518 = vadd.f32 %v323, %v454
    %v519 = vadd.f32 %v324, %v455
    %v520 = vadd.f32 %v325, %v456
    %v521 = vadd.f32 %v326, %v457
    %v522 = vadd.f32 %v327, %v458
    %v523 = vadd.f32 %v328, %v459
    %v524 = vadd.f32 %v329, %v460
    %v525 = vadd.f32 %v330, %v461
    %v526 = vadd.f32 %v331, %v462
    %v527 = vadd.f32 %v332, %v463
    %v528 = vadd.f32 %v333, %v464
    %v529 = vadd.f32 %v334, %v465
    %v530 = vadd.f32 %v335, %v466
    %v531 = vadd.f32 %v336, %v467
    %v532 = vadd.f32 %v337, %v468
    %v533 = vadd.f32 %v338, %v469
    %v534 = vadd.f32 %v339, %v470
    %v535 = vadd.f32 %v340, %v471
    %v536 = vadd.f32 %v341, %v472
    %v537 = vadd.f32 %v342, %v473
    %v538 = vadd.f32 %v343, %v474
    %v539 = vadd.f32 %v344, %v475
    %v540 = vadd.f32 %v345, %v476
    %v541 = vadd.f32 %v346, %v477
    %v542 = vadd.f32 %v347, %v478
    %v543 = vadd.f32 %v348, %v479
    %v544 = vadd.f32 %v349, %v480
    %v545 = vadd.f32 %v350, %v481
    %v546 = vadd.f32 %v351, %v482
    %v547 = vadd.f32 %v352, %v483
    %v548 = vadd.f32 %v353, %v484
    %v549 = vadd.f32 %v354, %v485
    %v550 = vadd.f32 %v355, %v486
    %v551 = vadd.f32 %v356, %v487
    %v552 = vadd.f32 %v357, %v488
    %v553 = vadd.f32 %v358, %v489
    %v554 = vadd.f32 %v359, %v490
    %v555 = vadd.f32 %v360, %v491
    %v556 = vadd.f32 %v361, %v492
    %s557 = sld [smem:[#allocation2 + $0x3]]
    %s558 = scalar_lea.vmem [#allocation6], 1536
    %v559 = vld [vmem:[%s558] sm:$0xff]
    %v560 = vld [vmem:[%s558 + $0x8] sm:$0xff]
    %v561 = vld [vmem:[%s558 + $0x10] sm:$0xff]
    %v562 = vld [vmem:[%s558 + $0x18] sm:$0xff]
    %v563 = vld [vmem:[%s558 + $0x20] sm:$0xff]
    %v564 = vld [vmem:[%s558 + $0x28] sm:$0xff]
    %v565 = vld [vmem:[%s558 + $0x30] sm:$0xff]
    %v566 = vld [vmem:[%s558 + $0x38] sm:$0xff]
    %v567 = vld [vmem:[%s558 + $0x40] sm:$0xff]
    %v568 = vld [vmem:[%s558 + $0x48] sm:$0xff]
    %v569 = vld [vmem:[%s558 + $0x50] sm:$0xff]
    %v570 = vld [vmem:[%s558 + $0x58] sm:$0xff]
    %v571 = vld [vmem:[%s558 + $0x60] sm:$0xff]
    %v572 = vld [vmem:[%s558 + $0x68] sm:$0xff]
    %v573 = vld [vmem:[%s558 + $0x70] sm:$0xff]
    %v574 = vld [vmem:[%s558 + $0x78] sm:$0xff]
    %v575 = vld [vmem:[%s558 + $0x80] sm:$0xff]
    %v576 = vld [vmem:[%s558 + $0x88] sm:$0xff]
    %v577 = vld [vmem:[%s558 + $0x90] sm:$0xff]
    %v578 = vld [vmem:[%s558 + $0x98] sm:$0xff]
    %v579 = vld [vmem:[%s558 + $0xa0] sm:$0xff]
    %v580 = vld [vmem:[%s558 + $0xa8] sm:$0xff]
    %v581 = vld [vmem:[%s558 + $0xb0] sm:$0xff]
    %v582 = vld [vmem:[%s558 + $0xb8] sm:$0xff]
    %v583 = vld [vmem:[%s558 + $0xc0] sm:$0xff]
    %v584 = vld [vmem:[%s558 + $0xc8] sm:$0xff]
    %v585 = vld [vmem:[%s558 + $0xd0] sm:$0xff]
    %v586 = vld [vmem:[%s558 + $0xd8] sm:$0xff]
    %v587 = vld [vmem:[%s558 + $0xe0] sm:$0xff]
    %v588 = vld [vmem:[%s558 + $0xe8] sm:$0xff]
    %v589 = vld [vmem:[%s558 + $0xf0] sm:$0xff]
    %v590 = vld [vmem:[%s558 + $0xf8] sm:$0xff]
    %v591 = vld [vmem:[%s558 + $0x100] sm:$0xff]
    %v592 = vld [vmem:[%s558 + $0x108] sm:$0xff]
    %v593 = vld [vmem:[%s558 + $0x110] sm:$0xff]
    %v594 = vld [vmem:[%s558 + $0x118] sm:$0xff]
    %v595 = vld [vmem:[%s558 + $0x120] sm:$0xff]
    %v596 = vld [vmem:[%s558 + $0x128] sm:$0xff]
    %v597 = vld [vmem:[%s558 + $0x130] sm:$0xff]
    %v598 = vld [vmem:[%s558 + $0x138] sm:$0xff]
    %v599 = vld [vmem:[%s558 + $0x140] sm:$0xff]
    %v600 = vld [vmem:[%s558 + $0x148] sm:$0xff]
    %v601 = vld [vmem:[%s558 + $0x150] sm:$0xff]
    %v602 = vld [vmem:[%s558 + $0x158] sm:$0xff]
    %v603 = vld [vmem:[%s558 + $0x160] sm:$0xff]
    %v604 = vld [vmem:[%s558 + $0x168] sm:$0xff]
    %v605 = vld [vmem:[%s558 + $0x170] sm:$0xff]
    %v606 = vld [vmem:[%s558 + $0x178] sm:$0xff]
    %v607 = vld [vmem:[%s558 + $0x180] sm:$0xff]
    %v608 = vld [vmem:[%s558 + $0x188] sm:$0xff]
    %v609 = vld [vmem:[%s558 + $0x190] sm:$0xff]
    %v610 = vld [vmem:[%s558 + $0x198] sm:$0xff]
    %v611 = vld [vmem:[%s558 + $0x1a0] sm:$0xff]
    %v612 = vld [vmem:[%s558 + $0x1a8] sm:$0xff]
    %v613 = vld [vmem:[%s558 + $0x1b0] sm:$0xff]
    %v614 = vld [vmem:[%s558 + $0x1b8] sm:$0xff]
    %v615 = vld [vmem:[%s558 + $0x1c0] sm:$0xff]
    %v616 = vld [vmem:[%s558 + $0x1c8] sm:$0xff]
    %v617 = vld [vmem:[%s558 + $0x1d0] sm:$0xff]
    %v618 = vld [vmem:[%s558 + $0x1d8] sm:$0xff]
    %v619 = vld [vmem:[%s558 + $0x1e0] sm:$0xff]
    %v620 = vld [vmem:[%s558 + $0x1e8] sm:$0xff]
    %v621 = vld [vmem:[%s558 + $0x1f0] sm:$0xff]
    %v622 = vld [vmem:[%s558 + $0x1f8] sm:$0xff]
    %v623 = vstv %s557
    %v624 = vmul.f32 %v623, %v559
    %v625 = vmul.f32 %v623, %v560
    %v626 = vmul.f32 %v623, %v561
    %v627 = vmul.f32 %v623, %v562
    %v628 = vmul.f32 %v623, %v563
    %v629 = vmul.f32 %v623, %v564
    %v630 = vmul.f32 %v623, %v565
    %v631 = vmul.f32 %v623, %v566
    %v632 = vmul.f32 %v623, %v567
    %v633 = vmul.f32 %v623, %v568
    %v634 = vmul.f32 %v623, %v569
    %v635 = vmul.f32 %v623, %v570
    %v636 = vmul.f32 %v623, %v571
    %v637 = vmul.f32 %v623, %v572
    %v638 = vmul.f32 %v623, %v573
    %v639 = vmul.f32 %v623, %v574
    %v640 = vmul.f32 %v623, %v575
    %v641 = vmul.f32 %v623, %v576
    %v642 = vmul.f32 %v623, %v577
    %v643 = vmul.f32 %v623, %v578
    %v644 = vmul.f32 %v623, %v579
    %v645 = vmul.f32 %v623, %v580
    %v646 = vmul.f32 %v623, %v581
    %v647 = vmul.f32 %v623, %v582
    %v648 = vmul.f32 %v623, %v583
    %v649 = vmul.f32 %v623, %v584
    %v650 = vmul.f32 %v623, %v585
    %v651 = vmul.f32 %v623, %v586
    %v652 = vmul.f32 %v623, %v587
    %v653 = vmul.f32 %v623, %v588
    %v654 = vmul.f32 %v623, %v589
    %v655 = vmul.f32 %v623, %v590
    %v656 = vmul.f32 %v623, %v591
    %v657 = vmul.f32 %v623, %v592
    %v658 = vmul.f32 %v623, %v593
    %v659 = vmul.f32 %v623, %v594
    %v660 = vmul.f32 %v623, %v595
    %v661 = vmul.f32 %v623, %v596
    %v662 = vmul.f32 %v623, %v597
    %v663 = vmul.f32 %v623, %v598
    %v664 = vmul.f32 %v623, %v599
    %v665 = vmul.f32 %v623, %v600
    %v666 = vmul.f32 %v623, %v601
    %v667 = vmul.f32 %v623, %v602
    %v668 = vmul.f32 %v623, %v603
    %v669 = vmul.f32 %v623, %v604
    %v670 = vmul.f32 %v623, %v605
    %v671 = vmul.f32 %v623, %v606
    %v672 = vmul.f32 %v623, %v607
    %v673 = vmul.f32 %v623, %v608
    %v674 = vmul.f32 %v623, %v609
    %v675 = vmul.f32 %v623, %v610
    %v676 = vmul.f32 %v623, %v611
    %v677 = vmul.f32 %v623, %v612
    %v678 = vmul.f32 %v623, %v613
    %v679 = vmul.f32 %v623, %v614
    %v680 = vmul.f32 %v623, %v615
    %v681 = vmul.f32 %v623, %v616
    %v682 = vmul.f32 %v623, %v617
    %v683 = vmul.f32 %v623, %v618
    %v684 = vmul.f32 %v623, %v619
    %v685 = vmul.f32 %v623, %v620
    %v686 = vmul.f32 %v623, %v621
    %v687 = vmul.f32 %v623, %v622
    %v688 = vadd.f32 %v493, %v624
    %v689 = vadd.f32 %v494, %v625
    %v690 = vadd.f32 %v495, %v626
    %v691 = vadd.f32 %v496, %v627
    %v692 = vadd.f32 %v497, %v628
    %v693 = vadd.f32 %v498, %v629
    %v694 = vadd.f32 %v499, %v630
    %v695 = vadd.f32 %v500, %v631
    %v696 = vadd.f32 %v501, %v632
    %v697 = vadd.f32 %v502, %v633
    %v698 = vadd.f32 %v503, %v634
    %v699 = vadd.f32 %v504, %v635
    %v700 = vadd.f32 %v505, %v636
    %v701 = vadd.f32 %v506, %v637
    %v702 = vadd.f32 %v507, %v638
    %v703 = vadd.f32 %v508, %v639
    %v704 = vadd.f32 %v509, %v640
    %v705 = vadd.f32 %v510, %v641
    %v706 = vadd.f32 %v511, %v642
    %v707 = vadd.f32 %v512, %v643
    %v708 = vadd.f32 %v513, %v644
    %v709 = vadd.f32 %v514, %v645
    %v710 = vadd.f32 %v515, %v646
    %v711 = vadd.f32 %v516, %v647
    %v712 = vadd.f32 %v517, %v648
    %v713 = vadd.f32 %v518, %v649
    %v714 = vadd.f32 %v519, %v650
    %v715 = vadd.f32 %v520, %v651
    %v716 = vadd.f32 %v521, %v652
    %v717 = vadd.f32 %v522, %v653
    %v718 = vadd.f32 %v523, %v654
    %v719 = vadd.f32 %v524, %v655
    %v720 = vadd.f32 %v525, %v656
    %v721 = vadd.f32 %v526, %v657
    %v722 = vadd.f32 %v527, %v658
    %v723 = vadd.f32 %v528, %v659
    %v724 = vadd.f32 %v529, %v660
    %v725 = vadd.f32 %v530, %v661
    %v726 = vadd.f32 %v531, %v662
    %v727 = vadd.f32 %v532, %v663
    %v728 = vadd.f32 %v533, %v664
    %v729 = vadd.f32 %v534, %v665
    %v730 = vadd.f32 %v535, %v666
    %v731 = vadd.f32 %v536, %v667
    %v732 = vadd.f32 %v537, %v668
    %v733 = vadd.f32 %v538, %v669
    %v734 = vadd.f32 %v539, %v670
    %v735 = vadd.f32 %v540, %v671
    %v736 = vadd.f32 %v541, %v672
    %v737 = vadd.f32 %v542, %v673
    %v738 = vadd.f32 %v543, %v674
    %v739 = vadd.f32 %v544, %v675
    %v740 = vadd.f32 %v545, %v676
    %v741 = vadd.f32 %v546, %v677
    %v742 = vadd.f32 %v547, %v678
    %v743 = vadd.f32 %v548, %v679
    %v744 = vadd.f32 %v549, %v680
    %v745 = vadd.f32 %v550, %v681
    %v746 = vadd.f32 %v551, %v682
    %v747 = vadd.f32 %v552, %v683
    %v748 = vadd.f32 %v553, %v684
    %v749 = vadd.f32 %v554, %v685
    %v750 = vadd.f32 %v555, %v686
    %v751 = vadd.f32 %v556, %v687
    %v752 = vpack.c.bf16 %v690, %v688
    %v753 = vpack.c.bf16 %v691, %v689
    %v754 = vpack.c.bf16 %v694, %v692
    %v755 = vpack.c.bf16 %v695, %v693
    %v756 = vpack.c.bf16 %v698, %v696
    %v757 = vpack.c.bf16 %v699, %v697
    %v758 = vpack.c.bf16 %v702, %v700
    %v759 = vpack.c.bf16 %v703, %v701
    %v760 = vpack.c.bf16 %v706, %v704
    %v761 = vpack.c.bf16 %v707, %v705
    %v762 = vpack.c.bf16 %v710, %v708
    %v763 = vpack.c.bf16 %v711, %v709
    %v764 = vpack.c.bf16 %v714, %v712
    %v765 = vpack.c.bf16 %v715, %v713
    %v766 = vpack.c.bf16 %v718, %v716
    %v767 = vpack.c.bf16 %v719, %v717
    %v768 = vpack.c.bf16 %v722, %v720
    %v769 = vpack.c.bf16 %v723, %v721
    %v770 = vpack.c.bf16 %v726, %v724
    %v771 = vpack.c.bf16 %v727, %v725
    %v772 = vpack.c.bf16 %v730, %v728
    %v773 = vpack.c.bf16 %v731, %v729
    %v774 = vpack.c.bf16 %v734, %v732
    %v775 = vpack.c.bf16 %v735, %v733
    %v776 = vpack.c.bf16 %v738, %v736
    %v777 = vpack.c.bf16 %v739, %v737
    %v778 = vpack.c.bf16 %v742, %v740
    %v779 = vpack.c.bf16 %v743, %v741
    %v780 = vpack.c.bf16 %v746, %v744
    %v781 = vpack.c.bf16 %v747, %v745
    %v782 = vpack.c.bf16 %v750, %v748
    %v783 = vpack.c.bf16 %v751, %v749
    %v816 = vunpack.c.l.b16 %v752
    %v817 = vunpack.c.l.b16 %v753
    %v818 = vunpack.c.h.b16 %v752
    %v819 = vunpack.c.h.b16 %v753
    %v820 = vunpack.c.l.b16 %v754
    %v821 = vunpack.c.l.b16 %v755
    %v822 = vunpack.c.h.b16 %v754
    %v823 = vunpack.c.h.b16 %v755
    %v824 = vunpack.c.l.b16 %v756
    %v825 = vunpack.c.l.b16 %v757
    %v826 = vunpack.c.h.b16 %v756
    %v827 = vunpack.c.h.b16 %v757
    %v828 = vunpack.c.l.b16 %v758
    %v829 = vunpack.c.l.b16 %v759
    %v830 = vunpack.c.h.b16 %v758
    %v831 = vunpack.c.h.b16 %v759
    %v832 = vunpack.c.l.b16 %v760
    %v833 = vunpack.c.l.b16 %v761
    %v834 = vunpack.c.h.b16 %v760
    %v835 = vunpack.c.h.b16 %v761
    %v836 = vunpack.c.l.b16 %v762
    %v837 = vunpack.c.l.b16 %v763
    %v838 = vunpack.c.h.b16 %v762
    %v839 = vunpack.c.h.b16 %v763
    %v840 = vunpack.c.l.b16 %v764
    %v841 = vunpack.c.l.b16 %v765
    %v842 = vunpack.c.h.b16 %v764
    %v843 = vunpack.c.h.b16 %v765
    %v844 = vunpack.c.l.b16 %v766
    %v845 = vunpack.c.l.b16 %v767
    %v846 = vunpack.c.h.b16 %v766
    %v847 = vunpack.c.h.b16 %v767
    %v848 = vunpack.c.l.b16 %v768
    %v849 = vunpack.c.l.b16 %v769
    %v850 = vunpack.c.h.b16 %v768
    %v851 = vunpack.c.h.b16 %v769
    %v852 = vunpack.c.l.b16 %v770
    %v853 = vunpack.c.l.b16 %v771
    %v854 = vunpack.c.h.b16 %v770
    %v855 = vunpack.c.h.b16 %v771
    %v856 = vunpack.c.l.b16 %v772
    %v857 = vunpack.c.l.b16 %v773
    %v858 = vunpack.c.h.b16 %v772
    %v859 = vunpack.c.h.b16 %v773
    %v860 = vunpack.c.l.b16 %v774
    %v861 = vunpack.c.l.b16 %v775
    %v862 = vunpack.c.h.b16 %v774
    %v863 = vunpack.c.h.b16 %v775
    %v864 = vunpack.c.l.b16 %v776
    %v865 = vunpack.c.l.b16 %v777
    %v866 = vunpack.c.h.b16 %v776
    %v867 = vunpack.c.h.b16 %v777
    %v868 = vunpack.c.l.b16 %v778
    %v869 = vunpack.c.l.b16 %v779
    %v870 = vunpack.c.h.b16 %v778
    %v871 = vunpack.c.h.b16 %v779
    %v872 = vunpack.c.l.b16 %v780
    %v873 = vunpack.c.l.b16 %v781
    %v874 = vunpack.c.h.b16 %v780
    %v875 = vunpack.c.h.b16 %v781
    %v876 = vunpack.c.l.b16 %v782
    %v877 = vunpack.c.l.b16 %v783
    %v878 = vunpack.c.h.b16 %v782
    %v879 = vunpack.c.h.b16 %v783
    %v880 = vpack.c.b16 %v817, %v816
    %v881 = vpack.c.b16 %v819, %v818
    %v882 = vpack.c.b16 %v821, %v820
    %v883 = vpack.c.b16 %v823, %v822
    %v884 = vpack.c.b16 %v825, %v824
    %v885 = vpack.c.b16 %v827, %v826
    %v886 = vpack.c.b16 %v829, %v828
    %v887 = vpack.c.b16 %v831, %v830
    %v888 = vpack.c.b16 %v833, %v832
    %v889 = vpack.c.b16 %v835, %v834
    %v890 = vpack.c.b16 %v837, %v836
    %v891 = vpack.c.b16 %v839, %v838
    %v892 = vpack.c.b16 %v841, %v840
    %v893 = vpack.c.b16 %v843, %v842
    %v894 = vpack.c.b16 %v845, %v844
    %v895 = vpack.c.b16 %v847, %v846
    %v896 = vpack.c.b16 %v849, %v848
    %v897 = vpack.c.b16 %v851, %v850
    %v898 = vpack.c.b16 %v853, %v852
    %v899 = vpack.c.b16 %v855, %v854
    %v900 = vpack.c.b16 %v857, %v856
    %v901 = vpack.c.b16 %v859, %v858
    %v902 = vpack.c.b16 %v861, %v860
    %v903 = vpack.c.b16 %v863, %v862
    %v904 = vpack.c.b16 %v865, %v864
    %v905 = vpack.c.b16 %v867, %v866
    %v906 = vpack.c.b16 %v869, %v868
    %v907 = vpack.c.b16 %v871, %v870
    %v908 = vpack.c.b16 %v873, %v872
    %v909 = vpack.c.b16 %v875, %v874
    %v910 = vpack.c.b16 %v877, %v876
    %v911 = vpack.c.b16 %v879, %v878
    %944 = vst [vmem:[#allocation7] sm:$0xff] %v880
    %945 = vst [vmem:[#allocation7 + $0x8] sm:$0xff] %v881
    %946 = vst [vmem:[#allocation7 + $0x10] sm:$0xff] %v882
    %947 = vst [vmem:[#allocation7 + $0x18] sm:$0xff] %v883
    %948 = vst [vmem:[#allocation7 + $0x20] sm:$0xff] %v884
    %949 = vst [vmem:[#allocation7 + $0x28] sm:$0xff] %v885
    %950 = vst [vmem:[#allocation7 + $0x30] sm:$0xff] %v886
    %951 = vst [vmem:[#allocation7 + $0x38] sm:$0xff] %v887
    %952 = vst [vmem:[#allocation7 + $0x40] sm:$0xff] %v888
    %953 = vst [vmem:[#allocation7 + $0x48] sm:$0xff] %v889
    %954 = vst [vmem:[#allocation7 + $0x50] sm:$0xff] %v890
    %955 = vst [vmem:[#allocation7 + $0x58] sm:$0xff] %v891
    %956 = vst [vmem:[#allocation7 + $0x60] sm:$0xff] %v892
    %957 = vst [vmem:[#allocation7 + $0x68] sm:$0xff] %v893
    %958 = vst [vmem:[#allocation7 + $0x70] sm:$0xff] %v894
    %959 = vst [vmem:[#allocation7 + $0x78] sm:$0xff] %v895
    %960 = vst [vmem:[#allocation7 + $0x80] sm:$0xff] %v896
    %961 = vst [vmem:[#allocation7 + $0x88] sm:$0xff] %v897
    %962 = vst [vmem:[#allocation7 + $0x90] sm:$0xff] %v898
    %963 = vst [vmem:[#allocation7 + $0x98] sm:$0xff] %v899
    %964 = vst [vmem:[#allocation7 + $0xa0] sm:$0xff] %v900
    %965 = vst [vmem:[#allocation7 + $0xa8] sm:$0xff] %v901
    %966 = vst [vmem:[#allocation7 + $0xb0] sm:$0xff] %v902
    %967 = vst [vmem:[#allocation7 + $0xb8] sm:$0xff] %v903
    %968 = vst [vmem:[#allocation7 + $0xc0] sm:$0xff] %v904
    %969 = vst [vmem:[#allocation7 + $0xc8] sm:$0xff] %v905
    %970 = vst [vmem:[#allocation7 + $0xd0] sm:$0xff] %v906
    %971 = vst [vmem:[#allocation7 + $0xd8] sm:$0xff] %v907
    %972 = vst [vmem:[#allocation7 + $0xe0] sm:$0xff] %v908
    %973 = vst [vmem:[#allocation7 + $0xe8] sm:$0xff] %v909
    %974 = vst [vmem:[#allocation7 + $0xf0] sm:$0xff] %v910
    %975 = vst [vmem:[#allocation7 + $0xf8] sm:$0xff] %v911
    %s976 = sld [smem:[#allocation2 + $0x80]]
    %v977 = vld [vmem:[#allocation6] sm:$0xff]
    %v978 = vld [vmem:[#allocation6 + $0x8] sm:$0xff]
    %v979 = vld [vmem:[#allocation6 + $0x10] sm:$0xff]
    %v980 = vld [vmem:[#allocation6 + $0x18] sm:$0xff]
    %v981 = vld [vmem:[#allocation6 + $0x20] sm:$0xff]
    %v982 = vld [vmem:[#allocation6 + $0x28] sm:$0xff]
    %v983 = vld [vmem:[#allocation6 + $0x30] sm:$0xff]
    %v984 = vld [vmem:[#allocation6 + $0x38] sm:$0xff]
    %v985 = vld [vmem:[#allocation6 + $0x40] sm:$0xff]
    %v986 = vld [vmem:[#allocation6 + $0x48] sm:$0xff]
    %v987 = vld [vmem:[#allocation6 + $0x50] sm:$0xff]
    %v988 = vld [vmem:[#allocation6 + $0x58] sm:$0xff]
    %v989 = vld [vmem:[#allocation6 + $0x60] sm:$0xff]
    %v990 = vld [vmem:[#allocation6 + $0x68] sm:$0xff]
    %v991 = vld [vmem:[#allocation6 + $0x70] sm:$0xff]
    %v992 = vld [vmem:[#allocation6 + $0x78] sm:$0xff]
    %v993 = vld [vmem:[#allocation6 + $0x80] sm:$0xff]
    %v994 = vld [vmem:[#allocation6 + $0x88] sm:$0xff]
    %v995 = vld [vmem:[#allocation6 + $0x90] sm:$0xff]
    %v996 = vld [vmem:[#allocation6 + $0x98] sm:$0xff]
    %v997 = vld [vmem:[#allocation6 + $0xa0] sm:$0xff]
    %v998 = vld [vmem:[#allocation6 + $0xa8] sm:$0xff]
    %v999 = vld [vmem:[#allocation6 + $0xb0] sm:$0xff]
    %v1000 = vld [vmem:[#allocation6 + $0xb8] sm:$0xff]
    %v1001 = vld [vmem:[#allocation6 + $0xc0] sm:$0xff]
    %v1002 = vld [vmem:[#allocation6 + $0xc8] sm:$0xff]
    %v1003 = vld [vmem:[#allocation6 + $0xd0] sm:$0xff]
    %v1004 = vld [vmem:[#allocation6 + $0xd8] sm:$0xff]
    %v1005 = vld [vmem:[#allocation6 + $0xe0] sm:$0xff]
    %v1006 = vld [vmem:[#allocation6 + $0xe8] sm:$0xff]
    %v1007 = vld [vmem:[#allocation6 + $0xf0] sm:$0xff]
    %v1008 = vld [vmem:[#allocation6 + $0xf8] sm:$0xff]
    %v1009 = vld [vmem:[#allocation6 + $0x100] sm:$0xff]
    %v1010 = vld [vmem:[#allocation6 + $0x108] sm:$0xff]
    %v1011 = vld [vmem:[#allocation6 + $0x110] sm:$0xff]
    %v1012 = vld [vmem:[#allocation6 + $0x118] sm:$0xff]
    %v1013 = vld [vmem:[#allocation6 + $0x120] sm:$0xff]
    %v1014 = vld [vmem:[#allocation6 + $0x128] sm:$0xff]
    %v1015 = vld [vmem:[#allocation6 + $0x130] sm:$0xff]
    %v1016 = vld [vmem:[#allocation6 + $0x138] sm:$0xff]
    %v1017 = vld [vmem:[#allocation6 + $0x140] sm:$0xff]
    %v1018 = vld [vmem:[#allocation6 + $0x148] sm:$0xff]
    %v1019 = vld [vmem:[#allocation6 + $0x150] sm:$0xff]
    %v1020 = vld [vmem:[#allocation6 + $0x158] sm:$0xff]
    %v1021 = vld [vmem:[#allocation6 + $0x160] sm:$0xff]
    %v1022 = vld [vmem:[#allocation6 + $0x168] sm:$0xff]
    %v1023 = vld [vmem:[#allocation6 + $0x170] sm:$0xff]
    %v1024 = vld [vmem:[#allocation6 + $0x178] sm:$0xff]
    %v1025 = vld [vmem:[#allocation6 + $0x180] sm:$0xff]
    %v1026 = vld [vmem:[#allocation6 + $0x188] sm:$0xff]
    %v1027 = vld [vmem:[#allocation6 + $0x190] sm:$0xff]
    %v1028 = vld [vmem:[#allocation6 + $0x198] sm:$0xff]
    %v1029 = vld [vmem:[#allocation6 + $0x1a0] sm:$0xff]
    %v1030 = vld [vmem:[#allocation6 + $0x1a8] sm:$0xff]
    %v1031 = vld [vmem:[#allocation6 + $0x1b0] sm:$0xff]
    %v1032 = vld [vmem:[#allocation6 + $0x1b8] sm:$0xff]
    %v1033 = vld [vmem:[#allocation6 + $0x1c0] sm:$0xff]
    %v1034 = vld [vmem:[#allocation6 + $0x1c8] sm:$0xff]
    %v1035 = vld [vmem:[#allocation6 + $0x1d0] sm:$0xff]
    %v1036 = vld [vmem:[#allocation6 + $0x1d8] sm:$0xff]
    %v1037 = vld [vmem:[#allocation6 + $0x1e0] sm:$0xff]
    %v1038 = vld [vmem:[#allocation6 + $0x1e8] sm:$0xff]
    %v1039 = vld [vmem:[#allocation6 + $0x1f0] sm:$0xff]
    %v1040 = vld [vmem:[#allocation6 + $0x1f8] sm:$0xff]
    %v1041 = vstv %s976
    %v1042 = vmul.f32 %v1041, %v977
    %v1043 = vmul.f32 %v1041, %v978
    %v1044 = vmul.f32 %v1041, %v979
    %v1045 = vmul.f32 %v1041, %v980
    %v1046 = vmul.f32 %v1041, %v981
    %v1047 = vmul.f32 %v1041, %v982
    %v1048 = vmul.f32 %v1041, %v983
    %v1049 = vmul.f32 %v1041, %v984
    %v1050 = vmul.f32 %v1041, %v985
    %v1051 = vmul.f32 %v1041, %v986
    %v1052 = vmul.f32 %v1041, %v987
    %v1053 = vmul.f32 %v1041, %v988
    %v1054 = vmul.f32 %v1041, %v989
    %v1055 = vmul.f32 %v1041, %v990
    %v1056 = vmul.f32 %v1041, %v991
    %v1057 = vmul.f32 %v1041, %v992
    %v1058 = vmul.f32 %v1041, %v993
    %v1059 = vmul.f32 %v1041, %v994
    %v1060 = vmul.f32 %v1041, %v995
    %v1061 = vmul.f32 %v1041, %v996
    %v1062 = vmul.f32 %v1041, %v997
    %v1063 = vmul.f32 %v1041, %v998
    %v1064 = vmul.f32 %v1041, %v999
    %v1065 = vmul.f32 %v1041, %v1000
    %v1066 = vmul.f32 %v1041, %v1001
    %v1067 = vmul.f32 %v1041, %v1002
    %v1068 = vmul.f32 %v1041, %v1003
    %v1069 = vmul.f32 %v1041, %v1004
    %v1070 = vmul.f32 %v1041, %v1005
    %v1071 = vmul.f32 %v1041, %v1006
    %v1072 = vmul.f32 %v1041, %v1007
    %v1073 = vmul.f32 %v1041, %v1008
    %v1074 = vmul.f32 %v1041, %v1009
    %v1075 = vmul.f32 %v1041, %v1010
    %v1076 = vmul.f32 %v1041, %v1011
    %v1077 = vmul.f32 %v1041, %v1012
    %v1078 = vmul.f32 %v1041, %v1013
    %v1079 = vmul.f32 %v1041, %v1014
    %v1080 = vmul.f32 %v1041, %v1015
    %v1081 = vmul.f32 %v1041, %v1016
    %v1082 = vmul.f32 %v1041, %v1017
    %v1083 = vmul.f32 %v1041, %v1018
    %v1084 = vmul.f32 %v1041, %v1019
    %v1085 = vmul.f32 %v1041, %v1020
    %v1086 = vmul.f32 %v1041, %v1021
    %v1087 = vmul.f32 %v1041, %v1022
    %v1088 = vmul.f32 %v1041, %v1023
    %v1089 = vmul.f32 %v1041, %v1024
    %v1090 = vmul.f32 %v1041, %v1025
    %v1091 = vmul.f32 %v1041, %v1026
    %v1092 = vmul.f32 %v1041, %v1027
    %v1093 = vmul.f32 %v1041, %v1028
    %v1094 = vmul.f32 %v1041, %v1029
    %v1095 = vmul.f32 %v1041, %v1030
    %v1096 = vmul.f32 %v1041, %v1031
    %v1097 = vmul.f32 %v1041, %v1032
    %v1098 = vmul.f32 %v1041, %v1033
    %v1099 = vmul.f32 %v1041, %v1034
    %v1100 = vmul.f32 %v1041, %v1035
    %v1101 = vmul.f32 %v1041, %v1036
    %v1102 = vmul.f32 %v1041, %v1037
    %v1103 = vmul.f32 %v1041, %v1038
    %v1104 = vmul.f32 %v1041, %v1039
    %v1105 = vmul.f32 %v1041, %v1040
    %s1106 = sld [smem:[#allocation2 + $0x81]]
    %v1107 = vld [vmem:[%s168] sm:$0xff]
    %v1108 = vld [vmem:[%s168 + $0x8] sm:$0xff]
    %v1109 = vld [vmem:[%s168 + $0x10] sm:$0xff]
    %v1110 = vld [vmem:[%s168 + $0x18] sm:$0xff]
    %v1111 = vld [vmem:[%s168 + $0x20] sm:$0xff]
    %v1112 = vld [vmem:[%s168 + $0x28] sm:$0xff]
    %v1113 = vld [vmem:[%s168 + $0x30] sm:$0xff]
    %v1114 = vld [vmem:[%s168 + $0x38] sm:$0xff]
    %v1115 = vld [vmem:[%s168 + $0x40] sm:$0xff]
    %v1116 = vld [vmem:[%s168 + $0x48] sm:$0xff]
    %v1117 = vld [vmem:[%s168 + $0x50] sm:$0xff]
    %v1118 = vld [vmem:[%s168 + $0x58] sm:$0xff]
    %v1119 = vld [vmem:[%s168 + $0x60] sm:$0xff]
    %v1120 = vld [vmem:[%s168 + $0x68] sm:$0xff]
    %v1121 = vld [vmem:[%s168 + $0x70] sm:$0xff]
    %v1122 = vld [vmem:[%s168 + $0x78] sm:$0xff]
    %v1123 = vld [vmem:[%s168 + $0x80] sm:$0xff]
    %v1124 = vld [vmem:[%s168 + $0x88] sm:$0xff]
    %v1125 = vld [vmem:[%s168 + $0x90] sm:$0xff]
    %v1126 = vld [vmem:[%s168 + $0x98] sm:$0xff]
    %v1127 = vld [vmem:[%s168 + $0xa0] sm:$0xff]
    %v1128 = vld [vmem:[%s168 + $0xa8] sm:$0xff]
    %v1129 = vld [vmem:[%s168 + $0xb0] sm:$0xff]
    %v1130 = vld [vmem:[%s168 + $0xb8] sm:$0xff]
    %v1131 = vld [vmem:[%s168 + $0xc0] sm:$0xff]
    %v1132 = vld [vmem:[%s168 + $0xc8] sm:$0xff]
    %v1133 = vld [vmem:[%s168 + $0xd0] sm:$0xff]
    %v1134 = vld [vmem:[%s168 + $0xd8] sm:$0xff]
    %v1135 = vld [vmem:[%s168 + $0xe0] sm:$0xff]
    %v1136 = vld [vmem:[%s168 + $0xe8] sm:$0xff]
    %v1137 = vld [vmem:[%s168 + $0xf0] sm:$0xff]
    %v1138 = vld [vmem:[%s168 + $0xf8] sm:$0xff]
    %v1139 = vld [vmem:[%s168 + $0x100] sm:$0xff]
    %v1140 = vld [vmem:[%s168 + $0x108] sm:$0xff]
    %v1141 = vld [vmem:[%s168 + $0x110] sm:$0xff]
    %v1142 = vld [vmem:[%s168 + $0x118] sm:$0xff]
    %v1143 = vld [vmem:[%s168 + $0x120] sm:$0xff]
    %v1144 = vld [vmem:[%s168 + $0x128] sm:$0xff]
    %v1145 = vld [vmem:[%s168 + $0x130] sm:$0xff]
    %v1146 = vld [vmem:[%s168 + $0x138] sm:$0xff]
    %v1147 = vld [vmem:[%s168 + $0x140] sm:$0xff]
    %v1148 = vld [vmem:[%s168 + $0x148] sm:$0xff]
    %v1149 = vld [vmem:[%s168 + $0x150] sm:$0xff]
    %v1150 = vld [vmem:[%s168 + $0x158] sm:$0xff]
    %v1151 = vld [vmem:[%s168 + $0x160] sm:$0xff]
    %v1152 = vld [vmem:[%s168 + $0x168] sm:$0xff]
    %v1153 = vld [vmem:[%s168 + $0x170] sm:$0xff]
    %v1154 = vld [vmem:[%s168 + $0x178] sm:$0xff]
    %v1155 = vld [vmem:[%s168 + $0x180] sm:$0xff]
    %v1156 = vld [vmem:[%s168 + $0x188] sm:$0xff]
    %v1157 = vld [vmem:[%s168 + $0x190] sm:$0xff]
    %v1158 = vld [vmem:[%s168 + $0x198] sm:$0xff]
    %v1159 = vld [vmem:[%s168 + $0x1a0] sm:$0xff]
    %v1160 = vld [vmem:[%s168 + $0x1a8] sm:$0xff]
    %v1161 = vld [vmem:[%s168 + $0x1b0] sm:$0xff]
    %v1162 = vld [vmem:[%s168 + $0x1b8] sm:$0xff]
    %v1163 = vld [vmem:[%s168 + $0x1c0] sm:$0xff]
    %v1164 = vld [vmem:[%s168 + $0x1c8] sm:$0xff]
    %v1165 = vld [vmem:[%s168 + $0x1d0] sm:$0xff]
    %v1166 = vld [vmem:[%s168 + $0x1d8] sm:$0xff]
    %v1167 = vld [vmem:[%s168 + $0x1e0] sm:$0xff]
    %v1168 = vld [vmem:[%s168 + $0x1e8] sm:$0xff]
    %v1169 = vld [vmem:[%s168 + $0x1f0] sm:$0xff]
    %v1170 = vld [vmem:[%s168 + $0x1f8] sm:$0xff]
    %v1171 = vstv %s1106
    %v1172 = vmul.f32 %v1171, %v1107
    %v1173 = vmul.f32 %v1171, %v1108
    %v1174 = vmul.f32 %v1171, %v1109
    %v1175 = vmul.f32 %v1171, %v1110
    %v1176 = vmul.f32 %v1171, %v1111
    %v1177 = vmul.f32 %v1171, %v1112
    %v1178 = vmul.f32 %v1171, %v1113
    %v1179 = vmul.f32 %v1171, %v1114
    %v1180 = vmul.f32 %v1171, %v1115
    %v1181 = vmul.f32 %v1171, %v1116
    %v1182 = vmul.f32 %v1171, %v1117
    %v1183 = vmul.f32 %v1171, %v1118
    %v1184 = vmul.f32 %v1171, %v1119
    %v1185 = vmul.f32 %v1171, %v1120
    %v1186 = vmul.f32 %v1171, %v1121
    %v1187 = vmul.f32 %v1171, %v1122
    %v1188 = vmul.f32 %v1171, %v1123
    %v1189 = vmul.f32 %v1171, %v1124
    %v1190 = vmul.f32 %v1171, %v1125
    %v1191 = vmul.f32 %v1171, %v1126
    %v1192 = vmul.f32 %v1171, %v1127
    %v1193 = vmul.f32 %v1171, %v1128
    %v1194 = vmul.f32 %v1171, %v1129
    %v1195 = vmul.f32 %v1171, %v1130
    %v1196 = vmul.f32 %v1171, %v1131
    %v1197 = vmul.f32 %v1171, %v1132
    %v1198 = vmul.f32 %v1171, %v1133
    %v1199 = vmul.f32 %v1171, %v1134
    %v1200 = vmul.f32 %v1171, %v1135
    %v1201 = vmul.f32 %v1171, %v1136
    %v1202 = vmul.f32 %v1171, %v1137
    %v1203 = vmul.f32 %v1171, %v1138
    %v1204 = vmul.f32 %v1171, %v1139
    %v1205 = vmul.f32 %v1171, %v1140
    %v1206 = vmul.f32 %v1171, %v1141
    %v1207 = vmul.f32 %v1171, %v1142
    %v1208 = vmul.f32 %v1171, %v1143
    %v1209 = vmul.f32 %v1171, %v1144
    %v1210 = vmul.f32 %v1171, %v1145
    %v1211 = vmul.f32 %v1171, %v1146
    %v1212 = vmul.f32 %v1171, %v1147
    %v1213 = vmul.f32 %v1171, %v1148
    %v1214 = vmul.f32 %v1171, %v1149
    %v1215 = vmul.f32 %v1171, %v1150
    %v1216 = vmul.f32 %v1171, %v1151
    %v1217 = vmul.f32 %v1171, %v1152
    %v1218 = vmul.f32 %v1171, %v1153
    %v1219 = vmul.f32 %v1171, %v1154
    %v1220 = vmul.f32 %v1171, %v1155
    %v1221 = vmul.f32 %v1171, %v1156
    %v1222 = vmul.f32 %v1171, %v1157
    %v1223 = vmul.f32 %v1171, %v1158
    %v1224 = vmul.f32 %v1171, %v1159
    %v1225 = vmul.f32 %v1171, %v1160
    %v1226 = vmul.f32 %v1171, %v1161
    %v1227 = vmul.f32 %v1171, %v1162
    %v1228 = vmul.f32 %v1171, %v1163
    %v1229 = vmul.f32 %v1171, %v1164
    %v1230 = vmul.f32 %v1171, %v1165
    %v1231 = vmul.f32 %v1171, %v1166
    %v1232 = vmul.f32 %v1171, %v1167
    %v1233 = vmul.f32 %v1171, %v1168
    %v1234 = vmul.f32 %v1171, %v1169
    %v1235 = vmul.f32 %v1171, %v1170
    %v1236 = vadd.f32 %v1042, %v1172
    %v1237 = vadd.f32 %v1043, %v1173
    %v1238 = vadd.f32 %v1044, %v1174
    %v1239 = vadd.f32 %v1045, %v1175
    %v1240 = vadd.f32 %v1046, %v1176
    %v1241 = vadd.f32 %v1047, %v1177
    %v1242 = vadd.f32 %v1048, %v1178
    %v1243 = vadd.f32 %v1049, %v1179
    %v1244 = vadd.f32 %v1050, %v1180
    %v1245 = vadd.f32 %v1051, %v1181
    %v1246 = vadd.f32 %v1052, %v1182
    %v1247 = vadd.f32 %v1053, %v1183
    %v1248 = vadd.f32 %v1054, %v1184
    %v1249 = vadd.f32 %v1055, %v1185
    %v1250 = vadd.f32 %v1056, %v1186
    %v1251 = vadd.f32 %v1057, %v1187
    %v1252 = vadd.f32 %v1058, %v1188
    %v1253 = vadd.f32 %v1059, %v1189
    %v1254 = vadd.f32 %v1060, %v1190
    %v1255 = vadd.f32 %v1061, %v1191
    %v1256 = vadd.f32 %v1062, %v1192
    %v1257 = vadd.f32 %v1063, %v1193
    %v1258 = vadd.f32 %v1064, %v1194
    %v1259 = vadd.f32 %v1065, %v1195
    %v1260 = vadd.f32 %v1066, %v1196
    %v1261 = vadd.f32 %v1067, %v1197
    %v1262 = vadd.f32 %v1068, %v1198
    %v1263 = vadd.f32 %v1069, %v1199
    %v1264 = vadd.f32 %v1070, %v1200
    %v1265 = vadd.f32 %v1071, %v1201
    %v1266 = vadd.f32 %v1072, %v1202
    %v1267 = vadd.f32 %v1073, %v1203
    %v1268 = vadd.f32 %v1074, %v1204
    %v1269 = vadd.f32 %v1075, %v1205
    %v1270 = vadd.f32 %v1076, %v1206
    %v1271 = vadd.f32 %v1077, %v1207
    %v1272 = vadd.f32 %v1078, %v1208
    %v1273 = vadd.f32 %v1079, %v1209
    %v1274 = vadd.f32 %v1080, %v1210
    %v1275 = vadd.f32 %v1081, %v1211
    %v1276 = vadd.f32 %v1082, %v1212
    %v1277 = vadd.f32 %v1083, %v1213
    %v1278 = vadd.f32 %v1084, %v1214
    %v1279 = vadd.f32 %v1085, %v1215
    %v1280 = vadd.f32 %v1086, %v1216
    %v1281 = vadd.f32 %v1087, %v1217
    %v1282 = vadd.f32 %v1088, %v1218
    %v1283 = vadd.f32 %v1089, %v1219
    %v1284 = vadd.f32 %v1090, %v1220
    %v1285 = vadd.f32 %v1091, %v1221
    %v1286 = vadd.f32 %v1092, %v1222
    %v1287 = vadd.f32 %v1093, %v1223
    %v1288 = vadd.f32 %v1094, %v1224
    %v1289 = vadd.f32 %v1095, %v1225
    %v1290 = vadd.f32 %v1096, %v1226
    %v1291 = vadd.f32 %v1097, %v1227
    %v1292 = vadd.f32 %v1098, %v1228
    %v1293 = vadd.f32 %v1099, %v1229
    %v1294 = vadd.f32 %v1100, %v1230
    %v1295 = vadd.f32 %v1101, %v1231
    %v1296 = vadd.f32 %v1102, %v1232
    %v1297 = vadd.f32 %v1103, %v1233
    %v1298 = vadd.f32 %v1104, %v1234
    %v1299 = vadd.f32 %v1105, %v1235
    %s1300 = sld [smem:[#allocation2 + $0x82]]
    %v1301 = vld [vmem:[%s363] sm:$0xff]
    %v1302 = vld [vmem:[%s363 + $0x8] sm:$0xff]
    %v1303 = vld [vmem:[%s363 + $0x10] sm:$0xff]
    %v1304 = vld [vmem:[%s363 + $0x18] sm:$0xff]
    %v1305 = vld [vmem:[%s363 + $0x20] sm:$0xff]
    %v1306 = vld [vmem:[%s363 + $0x28] sm:$0xff]
    %v1307 = vld [vmem:[%s363 + $0x30] sm:$0xff]
    %v1308 = vld [vmem:[%s363 + $0x38] sm:$0xff]
    %v1309 = vld [vmem:[%s363 + $0x40] sm:$0xff]
    %v1310 = vld [vmem:[%s363 + $0x48] sm:$0xff]
    %v1311 = vld [vmem:[%s363 + $0x50] sm:$0xff]
    %v1312 = vld [vmem:[%s363 + $0x58] sm:$0xff]
    %v1313 = vld [vmem:[%s363 + $0x60] sm:$0xff]
    %v1314 = vld [vmem:[%s363 + $0x68] sm:$0xff]
    %v1315 = vld [vmem:[%s363 + $0x70] sm:$0xff]
    %v1316 = vld [vmem:[%s363 + $0x78] sm:$0xff]
    %v1317 = vld [vmem:[%s363 + $0x80] sm:$0xff]
    %v1318 = vld [vmem:[%s363 + $0x88] sm:$0xff]
    %v1319 = vld [vmem:[%s363 + $0x90] sm:$0xff]
    %v1320 = vld [vmem:[%s363 + $0x98] sm:$0xff]
    %v1321 = vld [vmem:[%s363 + $0xa0] sm:$0xff]
    %v1322 = vld [vmem:[%s363 + $0xa8] sm:$0xff]
    %v1323 = vld [vmem:[%s363 + $0xb0] sm:$0xff]
    %v1324 = vld [vmem:[%s363 + $0xb8] sm:$0xff]
    %v1325 = vld [vmem:[%s363 + $0xc0] sm:$0xff]
    %v1326 = vld [vmem:[%s363 + $0xc8] sm:$0xff]
    %v1327 = vld [vmem:[%s363 + $0xd0] sm:$0xff]
    %v1328 = vld [vmem:[%s363 + $0xd8] sm:$0xff]
    %v1329 = vld [vmem:[%s363 + $0xe0] sm:$0xff]
    %v1330 = vld [vmem:[%s363 + $0xe8] sm:$0xff]
    %v1331 = vld [vmem:[%s363 + $0xf0] sm:$0xff]
    %v1332 = vld [vmem:[%s363 + $0xf8] sm:$0xff]
    %v1333 = vld [vmem:[%s363 + $0x100] sm:$0xff]
    %v1334 = vld [vmem:[%s363 + $0x108] sm:$0xff]
    %v1335 = vld [vmem:[%s363 + $0x110] sm:$0xff]
    %v1336 = vld [vmem:[%s363 + $0x118] sm:$0xff]
    %v1337 = vld [vmem:[%s363 + $0x120] sm:$0xff]
    %v1338 = vld [vmem:[%s363 + $0x128] sm:$0xff]
    %v1339 = vld [vmem:[%s363 + $0x130] sm:$0xff]
    %v1340 = vld [vmem:[%s363 + $0x138] sm:$0xff]
    %v1341 = vld [vmem:[%s363 + $0x140] sm:$0xff]
    %v1342 = vld [vmem:[%s363 + $0x148] sm:$0xff]
    %v1343 = vld [vmem:[%s363 + $0x150] sm:$0xff]
    %v1344 = vld [vmem:[%s363 + $0x158] sm:$0xff]
    %v1345 = vld [vmem:[%s363 + $0x160] sm:$0xff]
    %v1346 = vld [vmem:[%s363 + $0x168] sm:$0xff]
    %v1347 = vld [vmem:[%s363 + $0x170] sm:$0xff]
    %v1348 = vld [vmem:[%s363 + $0x178] sm:$0xff]
    %v1349 = vld [vmem:[%s363 + $0x180] sm:$0xff]
    %v1350 = vld [vmem:[%s363 + $0x188] sm:$0xff]
    %v1351 = vld [vmem:[%s363 + $0x190] sm:$0xff]
    %v1352 = vld [vmem:[%s363 + $0x198] sm:$0xff]
    %v1353 = vld [vmem:[%s363 + $0x1a0] sm:$0xff]
    %v1354 = vld [vmem:[%s363 + $0x1a8] sm:$0xff]
    %v1355 = vld [vmem:[%s363 + $0x1b0] sm:$0xff]
    %v1356 = vld [vmem:[%s363 + $0x1b8] sm:$0xff]
    %v1357 = vld [vmem:[%s363 + $0x1c0] sm:$0xff]
    %v1358 = vld [vmem:[%s363 + $0x1c8] sm:$0xff]
    %v1359 = vld [vmem:[%s363 + $0x1d0] sm:$0xff]
    %v1360 = vld [vmem:[%s363 + $0x1d8] sm:$0xff]
    %v1361 = vld [vmem:[%s363 + $0x1e0] sm:$0xff]
    %v1362 = vld [vmem:[%s363 + $0x1e8] sm:$0xff]
    %v1363 = vld [vmem:[%s363 + $0x1f0] sm:$0xff]
    %v1364 = vld [vmem:[%s363 + $0x1f8] sm:$0xff]
    %v1365 = vstv %s1300
    %v1366 = vmul.f32 %v1365, %v1301
    %v1367 = vmul.f32 %v1365, %v1302
    %v1368 = vmul.f32 %v1365, %v1303
    %v1369 = vmul.f32 %v1365, %v1304
    %v1370 = vmul.f32 %v1365, %v1305
    %v1371 = vmul.f32 %v1365, %v1306
    %v1372 = vmul.f32 %v1365, %v1307
    %v1373 = vmul.f32 %v1365, %v1308
    %v1374 = vmul.f32 %v1365, %v1309
    %v1375 = vmul.f32 %v1365, %v1310
    %v1376 = vmul.f32 %v1365, %v1311
    %v1377 = vmul.f32 %v1365, %v1312
    %v1378 = vmul.f32 %v1365, %v1313
    %v1379 = vmul.f32 %v1365, %v1314
    %v1380 = vmul.f32 %v1365, %v1315
    %v1381 = vmul.f32 %v1365, %v1316
    %v1382 = vmul.f32 %v1365, %v1317
    %v1383 = vmul.f32 %v1365, %v1318
    %v1384 = vmul.f32 %v1365, %v1319
    %v1385 = vmul.f32 %v1365, %v1320
    %v1386 = vmul.f32 %v1365, %v1321
    %v1387 = vmul.f32 %v1365, %v1322
    %v1388 = vmul.f32 %v1365, %v1323
    %v1389 = vmul.f32 %v1365, %v1324
    %v1390 = vmul.f32 %v1365, %v1325
    %v1391 = vmul.f32 %v1365, %v1326
    %v1392 = vmul.f32 %v1365, %v1327
    %v1393 = vmul.f32 %v1365, %v1328
    %v1394 = vmul.f32 %v1365, %v1329
    %v1395 = vmul.f32 %v1365, %v1330
    %v1396 = vmul.f32 %v1365, %v1331
    %v1397 = vmul.f32 %v1365, %v1332
    %v1398 = vmul.f32 %v1365, %v1333
    %v1399 = vmul.f32 %v1365, %v1334
    %v1400 = vmul.f32 %v1365, %v1335
    %v1401 = vmul.f32 %v1365, %v1336
    %v1402 = vmul.f32 %v1365, %v1337
    %v1403 = vmul.f32 %v1365, %v1338
    %v1404 = vmul.f32 %v1365, %v1339
    %v1405 = vmul.f32 %v1365, %v1340
    %v1406 = vmul.f32 %v1365, %v1341
    %v1407 = vmul.f32 %v1365, %v1342
    %v1408 = vmul.f32 %v1365, %v1343
    %v1409 = vmul.f32 %v1365, %v1344
    %v1410 = vmul.f32 %v1365, %v1345
    %v1411 = vmul.f32 %v1365, %v1346
    %v1412 = vmul.f32 %v1365, %v1347
    %v1413 = vmul.f32 %v1365, %v1348
    %v1414 = vmul.f32 %v1365, %v1349
    %v1415 = vmul.f32 %v1365, %v1350
    %v1416 = vmul.f32 %v1365, %v1351
    %v1417 = vmul.f32 %v1365, %v1352
    %v1418 = vmul.f32 %v1365, %v1353
    %v1419 = vmul.f32 %v1365, %v1354
    %v1420 = vmul.f32 %v1365, %v1355
    %v1421 = vmul.f32 %v1365, %v1356
    %v1422 = vmul.f32 %v1365, %v1357
    %v1423 = vmul.f32 %v1365, %v1358
    %v1424 = vmul.f32 %v1365, %v1359
    %v1425 = vmul.f32 %v1365, %v1360
    %v1426 = vmul.f32 %v1365, %v1361
    %v1427 = vmul.f32 %v1365, %v1362
    %v1428 = vmul.f32 %v1365, %v1363
    %v1429 = vmul.f32 %v1365, %v1364
    %v1430 = vadd.f32 %v1236, %v1366
    %v1431 = vadd.f32 %v1237, %v1367
    %v1432 = vadd.f32 %v1238, %v1368
    %v1433 = vadd.f32 %v1239, %v1369
    %v1434 = vadd.f32 %v1240, %v1370
    %v1435 = vadd.f32 %v1241, %v1371
    %v1436 = vadd.f32 %v1242, %v1372
    %v1437 = vadd.f32 %v1243, %v1373
    %v1438 = vadd.f32 %v1244, %v1374
    %v1439 = vadd.f32 %v1245, %v1375
    %v1440 = vadd.f32 %v1246, %v1376
    %v1441 = vadd.f32 %v1247, %v1377
    %v1442 = vadd.f32 %v1248, %v1378
    %v1443 = vadd.f32 %v1249, %v1379
    %v1444 = vadd.f32 %v1250, %v1380
    %v1445 = vadd.f32 %v1251, %v1381
    %v1446 = vadd.f32 %v1252, %v1382
    %v1447 = vadd.f32 %v1253, %v1383
    %v1448 = vadd.f32 %v1254, %v1384
    %v1449 = vadd.f32 %v1255, %v1385
    %v1450 = vadd.f32 %v1256, %v1386
    %v1451 = vadd.f32 %v1257, %v1387
    %v1452 = vadd.f32 %v1258, %v1388
    %v1453 = vadd.f32 %v1259, %v1389
    %v1454 = vadd.f32 %v1260, %v1390
    %v1455 = vadd.f32 %v1261, %v1391
    %v1456 = vadd.f32 %v1262, %v1392
    %v1457 = vadd.f32 %v1263, %v1393
    %v1458 = vadd.f32 %v1264, %v1394
    %v1459 = vadd.f32 %v1265, %v1395
    %v1460 = vadd.f32 %v1266, %v1396
    %v1461 = vadd.f32 %v1267, %v1397
    %v1462 = vadd.f32 %v1268, %v1398
    %v1463 = vadd.f32 %v1269, %v1399
    %v1464 = vadd.f32 %v1270, %v1400
    %v1465 = vadd.f32 %v1271, %v1401
    %v1466 = vadd.f32 %v1272, %v1402
    %v1467 = vadd.f32 %v1273, %v1403
    %v1468 = vadd.f32 %v1274, %v1404
    %v1469 = vadd.f32 %v1275, %v1405
    %v1470 = vadd.f32 %v1276, %v1406
    %v1471 = vadd.f32 %v1277, %v1407
    %v1472 = vadd.f32 %v1278, %v1408
    %v1473 = vadd.f32 %v1279, %v1409
    %v1474 = vadd.f32 %v1280, %v1410
    %v1475 = vadd.f32 %v1281, %v1411
    %v1476 = vadd.f32 %v1282, %v1412
    %v1477 = vadd.f32 %v1283, %v1413
    %v1478 = vadd.f32 %v1284, %v1414
    %v1479 = vadd.f32 %v1285, %v1415
    %v1480 = vadd.f32 %v1286, %v1416
    %v1481 = vadd.f32 %v1287, %v1417
    %v1482 = vadd.f32 %v1288, %v1418
    %v1483 = vadd.f32 %v1289, %v1419
    %v1484 = vadd.f32 %v1290, %v1420
    %v1485 = vadd.f32 %v1291, %v1421
    %v1486 = vadd.f32 %v1292, %v1422
    %v1487 = vadd.f32 %v1293, %v1423
    %v1488 = vadd.f32 %v1294, %v1424
    %v1489 = vadd.f32 %v1295, %v1425
    %v1490 = vadd.f32 %v1296, %v1426
    %v1491 = vadd.f32 %v1297, %v1427
    %v1492 = vadd.f32 %v1298, %v1428
    %v1493 = vadd.f32 %v1299, %v1429
    %s1494 = sld [smem:[#allocation2 + $0x83]]
    %v1495 = vld [vmem:[%s558] sm:$0xff]
    %v1496 = vld [vmem:[%s558 + $0x8] sm:$0xff]
    %v1497 = vld [vmem:[%s558 + $0x10] sm:$0xff]
    %v1498 = vld [vmem:[%s558 + $0x18] sm:$0xff]
    %v1499 = vld [vmem:[%s558 + $0x20] sm:$0xff]
    %v1500 = vld [vmem:[%s558 + $0x28] sm:$0xff]
    %v1501 = vld [vmem:[%s558 + $0x30] sm:$0xff]
    %v1502 = vld [vmem:[%s558 + $0x38] sm:$0xff]
    %v1503 = vld [vmem:[%s558 + $0x40] sm:$0xff]
    %v1504 = vld [vmem:[%s558 + $0x48] sm:$0xff]
    %v1505 = vld [vmem:[%s558 + $0x50] sm:$0xff]
    %v1506 = vld [vmem:[%s558 + $0x58] sm:$0xff]
    %v1507 = vld [vmem:[%s558 + $0x60] sm:$0xff]
    %v1508 = vld [vmem:[%s558 + $0x68] sm:$0xff]
    %v1509 = vld [vmem:[%s558 + $0x70] sm:$0xff]
    %v1510 = vld [vmem:[%s558 + $0x78] sm:$0xff]
    %v1511 = vld [vmem:[%s558 + $0x80] sm:$0xff]
    %v1512 = vld [vmem:[%s558 + $0x88] sm:$0xff]
    %v1513 = vld [vmem:[%s558 + $0x90] sm:$0xff]
    %v1514 = vld [vmem:[%s558 + $0x98] sm:$0xff]
    %v1515 = vld [vmem:[%s558 + $0xa0] sm:$0xff]
    %v1516 = vld [vmem:[%s558 + $0xa8] sm:$0xff]
    %v1517 = vld [vmem:[%s558 + $0xb0] sm:$0xff]
    %v1518 = vld [vmem:[%s558 + $0xb8] sm:$0xff]
    %v1519 = vld [vmem:[%s558 + $0xc0] sm:$0xff]
    %v1520 = vld [vmem:[%s558 + $0xc8] sm:$0xff]
    %v1521 = vld [vmem:[%s558 + $0xd0] sm:$0xff]
    %v1522 = vld [vmem:[%s558 + $0xd8] sm:$0xff]
    %v1523 = vld [vmem:[%s558 + $0xe0] sm:$0xff]
    %v1524 = vld [vmem:[%s558 + $0xe8] sm:$0xff]
    %v1525 = vld [vmem:[%s558 + $0xf0] sm:$0xff]
    %v1526 = vld [vmem:[%s558 + $0xf8] sm:$0xff]
    %v1527 = vld [vmem:[%s558 + $0x100] sm:$0xff]
    %v1528 = vld [vmem:[%s558 + $0x108] sm:$0xff]
    %v1529 = vld [vmem:[%s558 + $0x110] sm:$0xff]
    %v1530 = vld [vmem:[%s558 + $0x118] sm:$0xff]
    %v1531 = vld [vmem:[%s558 + $0x120] sm:$0xff]
    %v1532 = vld [vmem:[%s558 + $0x128] sm:$0xff]
    %v1533 = vld [vmem:[%s558 + $0x130] sm:$0xff]
    %v1534 = vld [vmem:[%s558 + $0x138] sm:$0xff]
    %v1535 = vld [vmem:[%s558 + $0x140] sm:$0xff]
    %v1536 = vld [vmem:[%s558 + $0x148] sm:$0xff]
    %v1537 = vld [vmem:[%s558 + $0x150] sm:$0xff]
    %v1538 = vld [vmem:[%s558 + $0x158] sm:$0xff]
    %v1539 = vld [vmem:[%s558 + $0x160] sm:$0xff]
    %v1540 = vld [vmem:[%s558 + $0x168] sm:$0xff]
    %v1541 = vld [vmem:[%s558 + $0x170] sm:$0xff]
    %v1542 = vld [vmem:[%s558 + $0x178] sm:$0xff]
    %v1543 = vld [vmem:[%s558 + $0x180] sm:$0xff]
    %v1544 = vld [vmem:[%s558 + $0x188] sm:$0xff]
    %v1545 = vld [vmem:[%s558 + $0x190] sm:$0xff]
    %v1546 = vld [vmem:[%s558 + $0x198] sm:$0xff]
    %v1547 = vld [vmem:[%s558 + $0x1a0] sm:$0xff]
    %v1548 = vld [vmem:[%s558 + $0x1a8] sm:$0xff]
    %v1549 = vld [vmem:[%s558 + $0x1b0] sm:$0xff]
    %v1550 = vld [vmem:[%s558 + $0x1b8] sm:$0xff]
    %v1551 = vld [vmem:[%s558 + $0x1c0] sm:$0xff]
    %v1552 = vld [vmem:[%s558 + $0x1c8] sm:$0xff]
    %v1553 = vld [vmem:[%s558 + $0x1d0] sm:$0xff]
    %v1554 = vld [vmem:[%s558 + $0x1d8] sm:$0xff]
    %v1555 = vld [vmem:[%s558 + $0x1e0] sm:$0xff]
    %v1556 = vld [vmem:[%s558 + $0x1e8] sm:$0xff]
    %v1557 = vld [vmem:[%s558 + $0x1f0] sm:$0xff]
    %v1558 = vld [vmem:[%s558 + $0x1f8] sm:$0xff]
    %v1559 = vstv %s1494
    %v1560 = vmul.f32 %v1559, %v1495
    %v1561 = vmul.f32 %v1559, %v1496
    %v1562 = vmul.f32 %v1559, %v1497
    %v1563 = vmul.f32 %v1559, %v1498
    %v1564 = vmul.f32 %v1559, %v1499
    %v1565 = vmul.f32 %v1559, %v1500
    %v1566 = vmul.f32 %v1559, %v1501
    %v1567 = vmul.f32 %v1559, %v1502
    %v1568 = vmul.f32 %v1559, %v1503
    %v1569 = vmul.f32 %v1559, %v1504
    %v1570 = vmul.f32 %v1559, %v1505
    %v1571 = vmul.f32 %v1559, %v1506
    %v1572 = vmul.f32 %v1559, %v1507
    %v1573 = vmul.f32 %v1559, %v1508
    %v1574 = vmul.f32 %v1559, %v1509
    %v1575 = vmul.f32 %v1559, %v1510
    %v1576 = vmul.f32 %v1559, %v1511
    %v1577 = vmul.f32 %v1559, %v1512
    %v1578 = vmul.f32 %v1559, %v1513
    %v1579 = vmul.f32 %v1559, %v1514
    %v1580 = vmul.f32 %v1559, %v1515
    %v1581 = vmul.f32 %v1559, %v1516
    %v1582 = vmul.f32 %v1559, %v1517
    %v1583 = vmul.f32 %v1559, %v1518
    %v1584 = vmul.f32 %v1559, %v1519
    %v1585 = vmul.f32 %v1559, %v1520
    %v1586 = vmul.f32 %v1559, %v1521
    %v1587 = vmul.f32 %v1559, %v1522
    %v1588 = vmul.f32 %v1559, %v1523
    %v1589 = vmul.f32 %v1559, %v1524
    %v1590 = vmul.f32 %v1559, %v1525
    %v1591 = vmul.f32 %v1559, %v1526
    %v1592 = vmul.f32 %v1559, %v1527
    %v1593 = vmul.f32 %v1559, %v1528
    %v1594 = vmul.f32 %v1559, %v1529
    %v1595 = vmul.f32 %v1559, %v1530
    %v1596 = vmul.f32 %v1559, %v1531
    %v1597 = vmul.f32 %v1559, %v1532
    %v1598 = vmul.f32 %v1559, %v1533
    %v1599 = vmul.f32 %v1559, %v1534
    %v1600 = vmul.f32 %v1559, %v1535
    %v1601 = vmul.f32 %v1559, %v1536
    %v1602 = vmul.f32 %v1559, %v1537
    %v1603 = vmul.f32 %v1559, %v1538
    %v1604 = vmul.f32 %v1559, %v1539
    %v1605 = vmul.f32 %v1559, %v1540
    %v1606 = vmul.f32 %v1559, %v1541
    %v1607 = vmul.f32 %v1559, %v1542
    %v1608 = vmul.f32 %v1559, %v1543
    %v1609 = vmul.f32 %v1559, %v1544
    %v1610 = vmul.f32 %v1559, %v1545
    %v1611 = vmul.f32 %v1559, %v1546
    %v1612 = vmul.f32 %v1559, %v1547
    %v1613 = vmul.f32 %v1559, %v1548
    %v1614 = vmul.f32 %v1559, %v1549
    %v1615 = vmul.f32 %v1559, %v1550
    %v1616 = vmul.f32 %v1559, %v1551
    %v1617 = vmul.f32 %v1559, %v1552
    %v1618 = vmul.f32 %v1559, %v1553
    %v1619 = vmul.f32 %v1559, %v1554
    %v1620 = vmul.f32 %v1559, %v1555
    %v1621 = vmul.f32 %v1559, %v1556
    %v1622 = vmul.f32 %v1559, %v1557
    %v1623 = vmul.f32 %v1559, %v1558
    %v1624 = vadd.f32 %v1430, %v1560
    %v1625 = vadd.f32 %v1431, %v1561
    %v1626 = vadd.f32 %v1432, %v1562
    %v1627 = vadd.f32 %v1433, %v1563
    %v1628 = vadd.f32 %v1434, %v1564
    %v1629 = vadd.f32 %v1435, %v1565
    %v1630 = vadd.f32 %v1436, %v1566
    %v1631 = vadd.f32 %v1437, %v1567
    %v1632 = vadd.f32 %v1438, %v1568
    %v1633 = vadd.f32 %v1439, %v1569
    %v1634 = vadd.f32 %v1440, %v1570
    %v1635 = vadd.f32 %v1441, %v1571
    %v1636 = vadd.f32 %v1442, %v1572
    %v1637 = vadd.f32 %v1443, %v1573
    %v1638 = vadd.f32 %v1444, %v1574
    %v1639 = vadd.f32 %v1445, %v1575
    %v1640 = vadd.f32 %v1446, %v1576
    %v1641 = vadd.f32 %v1447, %v1577
    %v1642 = vadd.f32 %v1448, %v1578
    %v1643 = vadd.f32 %v1449, %v1579
    %v1644 = vadd.f32 %v1450, %v1580
    %v1645 = vadd.f32 %v1451, %v1581
    %v1646 = vadd.f32 %v1452, %v1582
    %v1647 = vadd.f32 %v1453, %v1583
    %v1648 = vadd.f32 %v1454, %v1584
    %v1649 = vadd.f32 %v1455, %v1585
    %v1650 = vadd.f32 %v1456, %v1586
    %v1651 = vadd.f32 %v1457, %v1587
    %v1652 = vadd.f32 %v1458, %v1588
    %v1653 = vadd.f32 %v1459, %v1589
    %v1654 = vadd.f32 %v1460, %v1590
    %v1655 = vadd.f32 %v1461, %v1591
    %v1656 = vadd.f32 %v1462, %v1592
    %v1657 = vadd.f32 %v1463, %v1593
    %v1658 = vadd.f32 %v1464, %v1594
    %v1659 = vadd.f32 %v1465, %v1595
    %v1660 = vadd.f32 %v1466, %v1596
    %v1661 = vadd.f32 %v1467, %v1597
    %v1662 = vadd.f32 %v1468, %v1598
    %v1663 = vadd.f32 %v1469, %v1599
    %v1664 = vadd.f32 %v1470, %v1600
    %v1665 = vadd.f32 %v1471, %v1601
    %v1666 = vadd.f32 %v1472, %v1602
    %v1667 = vadd.f32 %v1473, %v1603
    %v1668 = vadd.f32 %v1474, %v1604
    %v1669 = vadd.f32 %v1475, %v1605
    %v1670 = vadd.f32 %v1476, %v1606
    %v1671 = vadd.f32 %v1477, %v1607
    %v1672 = vadd.f32 %v1478, %v1608
    %v1673 = vadd.f32 %v1479, %v1609
    %v1674 = vadd.f32 %v1480, %v1610
    %v1675 = vadd.f32 %v1481, %v1611
    %v1676 = vadd.f32 %v1482, %v1612
    %v1677 = vadd.f32 %v1483, %v1613
    %v1678 = vadd.f32 %v1484, %v1614
    %v1679 = vadd.f32 %v1485, %v1615
    %v1680 = vadd.f32 %v1486, %v1616
    %v1681 = vadd.f32 %v1487, %v1617
    %v1682 = vadd.f32 %v1488, %v1618
    %v1683 = vadd.f32 %v1489, %v1619
    %v1684 = vadd.f32 %v1490, %v1620
    %v1685 = vadd.f32 %v1491, %v1621
    %v1686 = vadd.f32 %v1492, %v1622
    %v1687 = vadd.f32 %v1493, %v1623
    %v1688 = vpack.c.bf16 %v1626, %v1624
    %v1689 = vpack.c.bf16 %v1627, %v1625
    %v1690 = vpack.c.bf16 %v1630, %v1628
    %v1691 = vpack.c.bf16 %v1631, %v1629
    %v1692 = vpack.c.bf16 %v1634, %v1632
    %v1693 = vpack.c.bf16 %v1635, %v1633
    %v1694 = vpack.c.bf16 %v1638, %v1636
    %v1695 = vpack.c.bf16 %v1639, %v1637
    %v1696 = vpack.c.bf16 %v1642, %v1640
    %v1697 = vpack.c.bf16 %v1643, %v1641
    %v1698 = vpack.c.bf16 %v1646, %v1644
    %v1699 = vpack.c.bf16 %v1647, %v1645
    %v1700 = vpack.c.bf16 %v1650, %v1648
    %v1701 = vpack.c.bf16 %v1651, %v1649
    %v1702 = vpack.c.bf16 %v1654, %v1652
    %v1703 = vpack.c.bf16 %v1655, %v1653
    %v1704 = vpack.c.bf16 %v1658, %v1656
    %v1705 = vpack.c.bf16 %v1659, %v1657
    %v1706 = vpack.c.bf16 %v1662, %v1660
    %v1707 = vpack.c.bf16 %v1663, %v1661
    %v1708 = vpack.c.bf16 %v1666, %v1664
    %v1709 = vpack.c.bf16 %v1667, %v1665
    %v1710 = vpack.c.bf16 %v1670, %v1668
    %v1711 = vpack.c.bf16 %v1671, %v1669
    %v1712 = vpack.c.bf16 %v1674, %v1672
    %v1713 = vpack.c.bf16 %v1675, %v1673
    %v1714 = vpack.c.bf16 %v1678, %v1676
    %v1715 = vpack.c.bf16 %v1679, %v1677
    %v1716 = vpack.c.bf16 %v1682, %v1680
    %v1717 = vpack.c.bf16 %v1683, %v1681
    %v1718 = vpack.c.bf16 %v1686, %v1684
    %v1719 = vpack.c.bf16 %v1687, %v1685
    %v1752 = vunpack.c.l.b16 %v1688
    %v1753 = vunpack.c.l.b16 %v1689
    %v1754 = vunpack.c.h.b16 %v1688
    %v1755 = vunpack.c.h.b16 %v1689
    %v1756 = vunpack.c.l.b16 %v1690
    %v1757 = vunpack.c.l.b16 %v1691
    %v1758 = vunpack.c.h.b16 %v1690
    %v1759 = vunpack.c.h.b16 %v1691
    %v1760 = vunpack.c.l.b16 %v1692
    %v1761 = vunpack.c.l.b16 %v1693
    %v1762 = vunpack.c.h.b16 %v1692
    %v1763 = vunpack.c.h.b16 %v1693
    %v1764 = vunpack.c.l.b16 %v1694
    %v1765 = vunpack.c.l.b16 %v1695
    %v1766 = vunpack.c.h.b16 %v1694
    %v1767 = vunpack.c.h.b16 %v1695
    %v1768 = vunpack.c.l.b16 %v1696
    %v1769 = vunpack.c.l.b16 %v1697
    %v1770 = vunpack.c.h.b16 %v1696
    %v1771 = vunpack.c.h.b16 %v1697
    %v1772 = vunpack.c.l.b16 %v1698
    %v1773 = vunpack.c.l.b16 %v1699
    %v1774 = vunpack.c.h.b16 %v1698
    %v1775 = vunpack.c.h.b16 %v1699
    %v1776 = vunpack.c.l.b16 %v1700
    %v1777 = vunpack.c.l.b16 %v1701
    %v1778 = vunpack.c.h.b16 %v1700
    %v1779 = vunpack.c.h.b16 %v1701
    %v1780 = vunpack.c.l.b16 %v1702
    %v1781 = vunpack.c.l.b16 %v1703
    %v1782 = vunpack.c.h.b16 %v1702
    %v1783 = vunpack.c.h.b16 %v1703
    %v1784 = vunpack.c.l.b16 %v1704
    %v1785 = vunpack.c.l.b16 %v1705
    %v1786 = vunpack.c.h.b16 %v1704
    %v1787 = vunpack.c.h.b16 %v1705
    %v1788 = vunpack.c.l.b16 %v1706
    %v1789 = vunpack.c.l.b16 %v1707
    %v1790 = vunpack.c.h.b16 %v1706
    %v1791 = vunpack.c.h.b16 %v1707
    %v1792 = vunpack.c.l.b16 %v1708
    %v1793 = vunpack.c.l.b16 %v1709
    %v1794 = vunpack.c.h.b16 %v1708
    %v1795 = vunpack.c.h.b16 %v1709
    %v1796 = vunpack.c.l.b16 %v1710
    %v1797 = vunpack.c.l.b16 %v1711
    %v1798 = vunpack.c.h.b16 %v1710
    %v1799 = vunpack.c.h.b16 %v1711
    %v1800 = vunpack.c.l.b16 %v1712
    %v1801 = vunpack.c.l.b16 %v1713
    %v1802 = vunpack.c.h.b16 %v1712
    %v1803 = vunpack.c.h.b16 %v1713
    %v1804 = vunpack.c.l.b16 %v1714
    %v1805 = vunpack.c.l.b16 %v1715
    %v1806 = vunpack.c.h.b16 %v1714
    %v1807 = vunpack.c.h.b16 %v1715
    %v1808 = vunpack.c.l.b16 %v1716
    %v1809 = vunpack.c.l.b16 %v1717
    %v1810 = vunpack.c.h.b16 %v1716
    %v1811 = vunpack.c.h.b16 %v1717
    %v1812 = vunpack.c.l.b16 %v1718
    %v1813 = vunpack.c.l.b16 %v1719
    %v1814 = vunpack.c.h.b16 %v1718
    %v1815 = vunpack.c.h.b16 %v1719
    %v1816 = vpack.c.b16 %v1753, %v1752
    %v1817 = vpack.c.b16 %v1755, %v1754
    %v1818 = vpack.c.b16 %v1757, %v1756
    %v1819 = vpack.c.b16 %v1759, %v1758
    %v1820 = vpack.c.b16 %v1761, %v1760
    %v1821 = vpack.c.b16 %v1763, %v1762
    %v1822 = vpack.c.b16 %v1765, %v1764
    %v1823 = vpack.c.b16 %v1767, %v1766
    %v1824 = vpack.c.b16 %v1769, %v1768
    %v1825 = vpack.c.b16 %v1771, %v1770
    %v1826 = vpack.c.b16 %v1773, %v1772
    %v1827 = vpack.c.b16 %v1775, %v1774
    %v1828 = vpack.c.b16 %v1777, %v1776
    %v1829 = vpack.c.b16 %v1779, %v1778
    %v1830 = vpack.c.b16 %v1781, %v1780
    %v1831 = vpack.c.b16 %v1783, %v1782
    %v1832 = vpack.c.b16 %v1785, %v1784
    %v1833 = vpack.c.b16 %v1787, %v1786
    %v1834 = vpack.c.b16 %v1789, %v1788
    %v1835 = vpack.c.b16 %v1791, %v1790
    %v1836 = vpack.c.b16 %v1793, %v1792
    %v1837 = vpack.c.b16 %v1795, %v1794
    %v1838 = vpack.c.b16 %v1797, %v1796
    %v1839 = vpack.c.b16 %v1799, %v1798
    %v1840 = vpack.c.b16 %v1801, %v1800
    %v1841 = vpack.c.b16 %v1803, %v1802
    %v1842 = vpack.c.b16 %v1805, %v1804
    %v1843 = vpack.c.b16 %v1807, %v1806
    %v1844 = vpack.c.b16 %v1809, %v1808
    %v1845 = vpack.c.b16 %v1811, %v1810
    %v1846 = vpack.c.b16 %v1813, %v1812
    %v1847 = vpack.c.b16 %v1815, %v1814
    %s1880 = scalar_lea.vmem [#allocation7], 256
    %1881 = vst [vmem:[%s1880] sm:$0xff] %v1816
    %1882 = vst [vmem:[%s1880 + $0x8] sm:$0xff] %v1817
    %1883 = vst [vmem:[%s1880 + $0x10] sm:$0xff] %v1818
    %1884 = vst [vmem:[%s1880 + $0x18] sm:$0xff] %v1819
    %1885 = vst [vmem:[%s1880 + $0x20] sm:$0xff] %v1820
    %1886 = vst [vmem:[%s1880 + $0x28] sm:$0xff] %v1821
    %1887 = vst [vmem:[%s1880 + $0x30] sm:$0xff] %v1822
    %1888 = vst [vmem:[%s1880 + $0x38] sm:$0xff] %v1823
    %1889 = vst [vmem:[%s1880 + $0x40] sm:$0xff] %v1824
    %1890 = vst [vmem:[%s1880 + $0x48] sm:$0xff] %v1825
    %1891 = vst [vmem:[%s1880 + $0x50] sm:$0xff] %v1826
    %1892 = vst [vmem:[%s1880 + $0x58] sm:$0xff] %v1827
    %1893 = vst [vmem:[%s1880 + $0x60] sm:$0xff] %v1828
    %1894 = vst [vmem:[%s1880 + $0x68] sm:$0xff] %v1829
    %1895 = vst [vmem:[%s1880 + $0x70] sm:$0xff] %v1830
    %1896 = vst [vmem:[%s1880 + $0x78] sm:$0xff] %v1831
    %1897 = vst [vmem:[%s1880 + $0x80] sm:$0xff] %v1832
    %1898 = vst [vmem:[%s1880 + $0x88] sm:$0xff] %v1833
    %1899 = vst [vmem:[%s1880 + $0x90] sm:$0xff] %v1834
    %1900 = vst [vmem:[%s1880 + $0x98] sm:$0xff] %v1835
    %1901 = vst [vmem:[%s1880 + $0xa0] sm:$0xff] %v1836
    %1902 = vst [vmem:[%s1880 + $0xa8] sm:$0xff] %v1837
    %1903 = vst [vmem:[%s1880 + $0xb0] sm:$0xff] %v1838
    %1904 = vst [vmem:[%s1880 + $0xb8] sm:$0xff] %v1839
    %1905 = vst [vmem:[%s1880 + $0xc0] sm:$0xff] %v1840
    %1906 = vst [vmem:[%s1880 + $0xc8] sm:$0xff] %v1841
    %1907 = vst [vmem:[%s1880 + $0xd0] sm:$0xff] %v1842
    %1908 = vst [vmem:[%s1880 + $0xd8] sm:$0xff] %v1843
    %1909 = vst [vmem:[%s1880 + $0xe0] sm:$0xff] %v1844
    %1910 = vst [vmem:[%s1880 + $0xe8] sm:$0xff] %v1845
    %1911 = vst [vmem:[%s1880 + $0xf0] sm:$0xff] %v1846
    %1912 = vst [vmem:[%s1880 + $0xf8] sm:$0xff] %v1847
    // Predicated region
    $region18: #{tpu_custom_call.1} parent=1 // pred_check
      _
    $region19: #{tpu_custom_call.1} parent=1 // pred_check_branch
      %1914 = sbr.rel (0) target = $region21
    $region20: #{tpu_custom_call.1} parent=1 // pred_region
      %s1916 = ssub.s32 8192, 8192
      %1917 = vsyncadd [#allocation4], %s1916
      %s1918 = sshll.u32 [#allocation7], 4
      %s1919 = int_to_ptr.vmem [resolvable:$true] %s1918
      %1924 = dma.vmem_to_hbm [thread:$0]  %s1919, 8192, %s2, [#allocation4], 128, 128, 8
    $region21: #{tpu_custom_call.1} parent=1 // pred_fallthru
      _
    // Predicated region
    $region22: #{tpu_custom_call.1} parent=1 // pred_check
      _
    $region23: #{tpu_custom_call.1} parent=1 // pred_check_branch
      %1926 = sbr.rel (0) target = $region25
    $region24: #{tpu_custom_call.1} parent=1 // pred_region
      %1927 = dma.done [#allocation4], 8192
    $region25: #{tpu_custom_call.1} parent=1 // pred_fallthru
      _
    %1928 = vsyncpa [#allocation3], 1
    %1929 = vsyncpa [#allocation4], 1
    %1930 = vsyncpa [#allocation5], 1

</llo_original>
